<compile_context>
chip_gen: v6e
topology: v6e:2x2x1
jax: 0.10.0
libtpu: 0.0.40
codegen_flags: <defaults>
</compile_context>

<pallas_src>
import math

import jax
import jax.numpy as jnp
from jax import lax
from jax.experimental import pallas as pl
from jax.experimental.pallas import tpu as pltpu


def _make_clip_layer_kernel(n_head: int, bblk: int, seq: int, dim: int):
    dh = dim // n_head
    G = bblk * n_head          # (head, batch) groups handled in one batched matmul
    M = bblk * seq             # matmul M dimension per grid step
    scale = 1.0 / math.sqrt(dh)
    eps = 1e-5
    NEG = -1e30                # finite mask value (safer than -inf)

    def kernel(x_ref,
               ln1_g_ref, ln1_b_ref,
               w_qkv_ref, b_qkv_ref,
               w_out_ref, b_out_ref,
               ln2_g_ref, ln2_b_ref,
               w_fc1_ref, b_fc1_ref,
               w_fc2_ref, b_fc2_ref,
               o_ref):
        x = x_ref[...].reshape(M, dim)                        # (M, D) f32

        # ---------------- LayerNorm 1 (f32) ----------------
        mu = jnp.mean(x, axis=-1, keepdims=True)
        xc = x - mu
        var = jnp.mean(xc * xc, axis=-1, keepdims=True)
        h = xc * lax.rsqrt(var + eps)
        h = h * ln1_g_ref[...] + ln1_b_ref[...]

        # -------- fused QKV projection: bf16 x bf16 -> f32 accumulate --------
        qkv = jnp.dot(h.astype(jnp.bfloat16), w_qkv_ref[...],
                      preferred_element_type=jnp.float32) + b_qkv_ref[...]   # (M, 3D)

        # Split heads into (G, S, dh) using only lane slices (proven pattern)
        # and leading-dim reshapes / axis-0 stack (lane dim never split).
        def split_heads(z):
            parts = [z[:, i * dh:(i + 1) * dh].reshape(bblk, seq, dh)
                     for i in range(n_head)]
            return jnp.stack(parts, axis=0).reshape(G, seq, dh)

        q = split_heads(qkv[:, 0 * dim:1 * dim]) * scale
        k = split_heads(qkv[:, 1 * dim:2 * dim])
        v = split_heads(qkv[:, 2 * dim:3 * dim])

        # ---- batched causal attention over all (head, batch) groups ----
        s = jnp.einsum("gqd,gkd->gqk",
                       q.astype(jnp.bfloat16), k.astype(jnp.bfloat16),
                       preferred_element_type=jnp.float32)                   # (G, S, S)
        row = lax.broadcasted_iota(jnp.int32, (G, seq, seq), 1)
        col = lax.broadcasted_iota(jnp.int32, (G, seq, seq), 2)
        s = jnp.where(col > row, NEG, s)
        s = s - jnp.max(s, axis=-1, keepdims=True)
        p = jnp.exp(s)
        p = p * pl.reciprocal(jnp.sum(p, axis=-1, keepdims=True), approx=True)
        o = jnp.einsum("gqk,gkd->gqd",
                       p.astype(jnp.bfloat16), v.astype(jnp.bfloat16),
                       preferred_element_type=jnp.float32)                   # (G, S, dh)

        # Merge heads back to (M, D): leading-dim reshapes + lane concat.
        o4 = o.reshape(n_head, bblk, seq, dh)
        attn = jnp.concatenate([o4[i].reshape(M, dh) for i in range(n_head)],
                               axis=-1)                                      # (M, D)
        attn = jnp.dot(attn.astype(jnp.bfloat16), w_out_ref[...],
                       preferred_element_type=jnp.float32) + b_out_ref[...]

        x = x + attn                                          # residual 1 (f32)

        # ---------------- LayerNorm 2 (f32) ----------------
        mu2 = jnp.mean(x, axis=-1, keepdims=True)
        xc2 = x - mu2
        var2 = jnp.mean(xc2 * xc2, axis=-1, keepdims=True)
        h2 = xc2 * lax.rsqrt(var2 + eps)
        h2 = h2 * ln2_g_ref[...] + ln2_b_ref[...]

        # ---------------- MLP with QuickGELU ----------------
        f = jnp.dot(h2.astype(jnp.bfloat16), w_fc1_ref[...],
                    preferred_element_type=jnp.float32) + b_fc1_ref[...]     # (M, 4D)
        f = f * jax.nn.sigmoid(1.702 * f)
        f = jnp.dot(f.astype(jnp.bfloat16), w_fc2_ref[...],
                    preferred_element_type=jnp.float32) + b_fc2_ref[...]     # (M, D)

        o_ref[...] = (x + f).reshape(bblk, seq, dim)          # residual 2

    return kernel


def _pick_block_batch(batch: int, seq: int) -> int:
    """Rows per grid step: aim for >=256 matmul rows, keep >=2 grid steps (v7x dual TC)."""
    target = max(1, -(-256 // max(seq, 1)))   # ceil(256 / seq)
    cap = max(1, batch // 2)                  # keep at least 2 grid steps when possible
    best = 1
    for c in range(1, batch + 1):
        if batch % c == 0 and c <= min(target, cap):
            best = c
    return best


def clip_layer_pallas(x, params, n_head):
    B, S, D = x.shape
    bblk = _pick_block_batch(B, S)
    grid = (B // bblk,)

    weight_order = [
        "ln1_g", "ln1_b",
        "w_qkv", "b_qkv",
        "w_out", "b_out",
        "ln2_g", "ln2_b",
        "w_fc1", "b_fc1",
        "w_fc2", "b_fc2",
    ]
    weights = [params[name] for name in weight_order]

    def rep_spec(arr):
        # Weights / biases: full-array block, same block at every grid step
        # (Pallas skips re-fetching an unchanged block index).
        nd = arr.ndim
        return pl.BlockSpec(arr.shape, lambda b, _nd=nd: (0,) * _nd)

    in_specs = [pl.BlockSpec((bblk, S, D), lambda b: (b, 0, 0))]
    in_specs += [rep_spec(w) for w in weights]
    out_spec = pl.BlockSpec((bblk, S, D), lambda b: (b, 0, 0))

    # Raise the scoped VMEM limit (default 32 MiB is too small for full bf16
    # weight residency at real CLIP widths), capped below physical capacity.
    try:
        vmem_cap = int(pltpu.get_tpu_info().vmem_capacity_bytes)
    except Exception:
        vmem_cap = 128 * 1024 * 1024
    vmem_limit = min(100 * 1024 * 1024, int(vmem_cap * 0.85))

    return pl.pallas_call(
        _make_clip_layer_kernel(n_head, bblk, S, D),
        out_shape=jax.ShapeDtypeStruct((B, S, D), jnp.float32),
        grid_spec=pltpu.PrefetchScalarGridSpec(
            num_scalar_prefetch=0,
            grid=grid,
            in_specs=in_specs,
            out_specs=out_spec,
        ),
        compiler_params=pltpu.CompilerParams(
            dimension_semantics=("parallel",),
            vmem_limit_bytes=vmem_limit,
        ),
    )(x, *weights)


def init_params(key, n_embd):
    D = n_embd
    ks = jax.random.split(key, 8)

    def w(k, shape):  # projection weights stored as bf16 (halves VMEM residency)
        return (jax.random.normal(k, shape, jnp.float32) * 0.02).astype(jnp.bfloat16)

    def b(k, shape):  # biases / LN params stay f32
        return jax.random.normal(k, shape, jnp.float32) * 0.02

    return dict(
        ln1_g=jnp.ones((1, D), jnp.float32),
        ln1_b=jnp.zeros((1, D), jnp.float32),
        w_qkv=w(ks[0], (D, 3 * D)),
        b_qkv=b(ks[1], (1, 3 * D)),
        w_out=w(ks[2], (D, D)),
        b_out=b(ks[3], (1, D)),
        ln2_g=jnp.ones((1, D), jnp.float32),
        ln2_b=jnp.zeros((1, D), jnp.float32),
        w_fc1=w(ks[4], (D, 4 * D)),
        b_fc1=b(ks[5], (1, 4 * D)),
        w_fc2=w(ks[6], (4 * D, D)),
        b_fc2=b(ks[7], (1, D)),
    )


def clip_layer_ref(x, params, n_head):
    """Pure-JAX f32 reference (uses the same bf16-quantized weights, cast to f32)."""
    B, S, D = x.shape
    dh = D // n_head
    eps = 1e-5

    def f32(name):
        return params[name].astype(jnp.float32)

    def ln(v, g, b):
        mu = jnp.mean(v, axis=-1, keepdims=True)
        var = jnp.mean((v - mu) ** 2, axis=-1, keepdims=True)
        return (v - mu) * lax.rsqrt(var + eps) * g + b

    residue = x
    h = ln(x, f32("ln1_g")[0], f32("ln1_b")[0])
    qkv = h @ f32("w_qkv") + f32("b_qkv")[0]
    q, k, v = jnp.split(qkv, 3, axis=-1)
    q = q.reshape(B, S, n_head, dh).transpose(0, 2, 1, 3)
    k = k.reshape(B, S, n_head, dh).transpose(0, 2, 1, 3)
    v = v.reshape(B, S, n_head, dh).transpose(0, 2, 1, 3)
    s = jnp.einsum("bhqd,bhkd->bhqk", q, k) / math.sqrt(dh)
    mask = jnp.triu(jnp.ones((S, S), bool), k=1)
    s = jnp.where(mask, -jnp.inf, s)
    p = jax.nn.softmax(s, axis=-1)
    attn = jnp.einsum("bhqk,bhkd->bhqd", p, v).transpose(0, 2, 1, 3).reshape(B, S, D)
    attn = attn @ f32("w_out") + f32("b_out")[0]
    x = residue + attn

    residue = x
    h2 = ln(x, f32("ln2_g")[0], f32("ln2_b")[0])
    f = h2 @ f32("w_fc1") + f32("b_fc1")[0]
    f = f * jax.nn.sigmoid(1.702 * f)
    f = f @ f32("w_fc2") + f32("b_fc2")[0]
    return residue + f


if __name__ == "__main__":
    B, S, D, H = 2, 8, 32, 4
    key = jax.random.PRNGKey(0)
    k_x, k_p = jax.random.split(key)
    x = jax.random.normal(k_x, (B, S, D), jnp.float32)
    params = init_params(k_p, D)

    out = jax.block_until_ready(clip_layer_pallas(x, params, H))
    ref = clip_layer_ref(x, params, H)

    assert out.shape == (B, S, D)
    max_err = float(jnp.max(jnp.abs(out - ref)))
    # bf16 matmul operands -> loosened tolerance vs. pure-f32 reference
    assert jnp.allclose(out, ref, rtol=2e-2, atol=2e-2), f"max abs err = {max_err}"
    print("KERNEL_OK")
</pallas_src>

<mosaic_0001>
module attributes {stable_mosaic.version = 11 : i64} {
  func.func @kernel(%arg0: i32, %arg1: memref<1x8x32xf32, #tpu.memory_space<vmem>>, %arg2: memref<1x32xf32, #tpu.memory_space<vmem>>, %arg3: memref<1x32xf32, #tpu.memory_space<vmem>>, %arg4: memref<32x96xbf16, #tpu.memory_space<vmem>>, %arg5: memref<1x96xf32, #tpu.memory_space<vmem>>, %arg6: memref<32x32xbf16, #tpu.memory_space<vmem>>, %arg7: memref<1x32xf32, #tpu.memory_space<vmem>>, %arg8: memref<1x32xf32, #tpu.memory_space<vmem>>, %arg9: memref<1x32xf32, #tpu.memory_space<vmem>>, %arg10: memref<32x128xbf16, #tpu.memory_space<vmem>>, %arg11: memref<1x128xf32, #tpu.memory_space<vmem>>, %arg12: memref<128x32xbf16, #tpu.memory_space<vmem>>, %arg13: memref<1x32xf32, #tpu.memory_space<vmem>>, %arg14: memref<1x8x32xf32, #tpu.memory_space<vmem>>) attributes {dimension_semantics = [#tpu.dimension_semantics<parallel>], iteration_bounds = array<i64: 2>, scalar_prefetch = 0 : i64, scratch_operands = 0 : i64, tpu.core_type = #tpu.core_type<tc>, window_params = [{transform_indices = @transform_0, window_bounds = array<i64: 1, 8, 32>}, {pipeline_mode = #tpu.pipeline_mode<synchronous>, transform_indices = @transform_1, window_bounds = array<i64: 1, 32>}, {pipeline_mode = #tpu.pipeline_mode<synchronous>, transform_indices = @transform_2, window_bounds = array<i64: 1, 32>}, {pipeline_mode = #tpu.pipeline_mode<synchronous>, transform_indices = @transform_3, window_bounds = array<i64: 32, 96>}, {pipeline_mode = #tpu.pipeline_mode<synchronous>, transform_indices = @transform_4, window_bounds = array<i64: 1, 96>}, {pipeline_mode = #tpu.pipeline_mode<synchronous>, transform_indices = @transform_5, window_bounds = array<i64: 32, 32>}, {pipeline_mode = #tpu.pipeline_mode<synchronous>, transform_indices = @transform_6, window_bounds = array<i64: 1, 32>}, {pipeline_mode = #tpu.pipeline_mode<synchronous>, transform_indices = @transform_7, window_bounds = array<i64: 1, 32>}, {pipeline_mode = #tpu.pipeline_mode<synchronous>, transform_indices = @transform_8, window_bounds = array<i64: 1, 32>}, {pipeline_mode = #tpu.pipeline_mode<synchronous>, transform_indices = @transform_9, window_bounds = array<i64: 32, 128>}, {pipeline_mode = #tpu.pipeline_mode<synchronous>, transform_indices = @transform_10, window_bounds = array<i64: 1, 128>}, {pipeline_mode = #tpu.pipeline_mode<synchronous>, transform_indices = @transform_11, window_bounds = array<i64: 128, 32>}, {pipeline_mode = #tpu.pipeline_mode<synchronous>, transform_indices = @transform_12, window_bounds = array<i64: 1, 32>}, {transform_indices = @transform_13, window_bounds = array<i64: 1, 8, 32>}]} {
    %c0 = arith.constant 0 : index
    %c0_0 = arith.constant 0 : index
    %c0_1 = arith.constant 0 : index
    %0 = vector.load %arg1[%c0, %c0_0, %c0_1] : memref<1x8x32xf32, #tpu.memory_space<vmem>>, vector<1x8x32xf32>
    %1 = vector.shape_cast %0 : vector<1x8x32xf32> to vector<8x32xf32>
    %cst = arith.constant dense<0.000000e+00> : vector<8xf32>
    %2 = vector.multi_reduction <add>, %1, %cst [1] : vector<8x32xf32> to vector<8xf32>
    %3 = vector.shape_cast %2 : vector<8xf32> to vector<8x1xf32>
    %cst_2 = arith.constant 3.200000e+01 : f32
    %4 = vector.broadcast %cst_2 : f32 to vector<8x1xf32>
    %5 = arith.divf %3, %4 : vector<8x1xf32>
    %6 = vector.broadcast %5 : vector<8x1xf32> to vector<8x32xf32>
    %7 = arith.subf %1, %6 : vector<8x32xf32>
    %8 = arith.mulf %7, %7 : vector<8x32xf32>
    %cst_3 = arith.constant dense<0.000000e+00> : vector<8xf32>
    %9 = vector.multi_reduction <add>, %8, %cst_3 [1] : vector<8x32xf32> to vector<8xf32>
    %10 = vector.shape_cast %9 : vector<8xf32> to vector<8x1xf32>
    %cst_4 = arith.constant 3.200000e+01 : f32
    %11 = vector.broadcast %cst_4 : f32 to vector<8x1xf32>
    %12 = arith.divf %10, %11 : vector<8x1xf32>
    %cst_5 = arith.constant 9.99999974E-6 : f32
    %13 = vector.broadcast %cst_5 : f32 to vector<8x1xf32>
    %14 = arith.addf %12, %13 : vector<8x1xf32>
    %15 = math.rsqrt %14 : vector<8x1xf32>
    %16 = vector.broadcast %15 : vector<8x1xf32> to vector<8x32xf32>
    %17 = arith.mulf %7, %16 : vector<8x32xf32>
    %c0_6 = arith.constant 0 : index
    %c0_7 = arith.constant 0 : index
    %18 = vector.load %arg2[%c0_6, %c0_7] : memref<1x32xf32, #tpu.memory_space<vmem>>, vector<1x32xf32>
    %19 = vector.broadcast %18 : vector<1x32xf32> to vector<8x32xf32>
    %20 = arith.mulf %17, %19 : vector<8x32xf32>
    %c0_8 = arith.constant 0 : index
    %c0_9 = arith.constant 0 : index
    %21 = vector.load %arg3[%c0_8, %c0_9] : memref<1x32xf32, #tpu.memory_space<vmem>>, vector<1x32xf32>
    %22 = vector.broadcast %21 : vector<1x32xf32> to vector<8x32xf32>
    %23 = arith.addf %20, %22 : vector<8x32xf32>
    %24 = arith.truncf %23 : vector<8x32xf32> to vector<8x32xbf16>
    %c0_10 = arith.constant 0 : index
    %c0_11 = arith.constant 0 : index
    %25 = vector.load %arg4[%c0_10, %c0_11] : memref<32x96xbf16, #tpu.memory_space<vmem>>, vector<32x96xbf16>
    %cst_12 = arith.constant dense<0.000000e+00> : vector<8x96xf32>
    %26 = tpu.matmul %24, %25, %cst_12 {dimension_numbers = #tpu.dot_dimension_numbers<[1], [0], [0], [1], [0, 0, 1, 1], [], []>} : vector<8x32xbf16>, vector<32x96xbf16>, vector<8x96xf32> -> vector<8x96xf32>
    %c0_13 = arith.constant 0 : index
    %c0_14 = arith.constant 0 : index
    %27 = vector.load %arg5[%c0_13, %c0_14] : memref<1x96xf32, #tpu.memory_space<vmem>>, vector<1x96xf32>
    %28 = vector.broadcast %27 : vector<1x96xf32> to vector<8x96xf32>
    %29 = arith.addf %26, %28 : vector<8x96xf32>
    %30 = vector.extract_strided_slice %29 {offsets = [0, 0], sizes = [8, 32], strides = [1, 1]} : vector<8x96xf32> to vector<8x32xf32>
    %31 = vector.extract_strided_slice %30 {offsets = [0, 0], sizes = [8, 8], strides = [1, 1]} : vector<8x32xf32> to vector<8x8xf32>
    %32 = vector.shape_cast %31 : vector<8x8xf32> to vector<1x8x8xf32>
    %33 = vector.extract_strided_slice %30 {offsets = [0, 8], sizes = [8, 8], strides = [1, 1]} : vector<8x32xf32> to vector<8x8xf32>
    %34 = vector.shape_cast %33 : vector<8x8xf32> to vector<1x8x8xf32>
    %35 = vector.extract_strided_slice %30 {offsets = [0, 16], sizes = [8, 8], strides = [1, 1]} : vector<8x32xf32> to vector<8x8xf32>
    %36 = vector.shape_cast %35 : vector<8x8xf32> to vector<1x8x8xf32>
    %37 = vector.extract_strided_slice %30 {offsets = [0, 24], sizes = [8, 8], strides = [1, 1]} : vector<8x32xf32> to vector<8x8xf32>
    %38 = vector.shape_cast %37 : vector<8x8xf32> to vector<1x8x8xf32>
    %39 = vector.shape_cast %32 : vector<1x8x8xf32> to vector<1x1x8x8xf32>
    %40 = vector.shape_cast %34 : vector<1x8x8xf32> to vector<1x1x8x8xf32>
    %41 = vector.shape_cast %36 : vector<1x8x8xf32> to vector<1x1x8x8xf32>
    %42 = vector.shape_cast %38 : vector<1x8x8xf32> to vector<1x1x8x8xf32>
    %43 = tpu.concatenate %39, %40, %41, %42 in 0 : vector<1x1x8x8xf32>, vector<1x1x8x8xf32>, vector<1x1x8x8xf32>, vector<1x1x8x8xf32> -> vector<4x1x8x8xf32>
    %44 = vector.shape_cast %43 : vector<4x1x8x8xf32> to vector<4x8x8xf32>
    %cst_15 = arith.constant 0.353553385 : f32
    %45 = vector.broadcast %cst_15 : f32 to vector<4x8x8xf32>
    %46 = arith.mulf %44, %45 : vector<4x8x8xf32>
    %47 = vector.extract_strided_slice %29 {offsets = [0, 32], sizes = [8, 32], strides = [1, 1]} : vector<8x96xf32> to vector<8x32xf32>
    %48 = vector.extract_strided_slice %47 {offsets = [0, 0], sizes = [8, 8], strides = [1, 1]} : vector<8x32xf32> to vector<8x8xf32>
    %49 = vector.shape_cast %48 : vector<8x8xf32> to vector<1x8x8xf32>
    %50 = vector.extract_strided_slice %47 {offsets = [0, 8], sizes = [8, 8], strides = [1, 1]} : vector<8x32xf32> to vector<8x8xf32>
    %51 = vector.shape_cast %50 : vector<8x8xf32> to vector<1x8x8xf32>
    %52 = vector.extract_strided_slice %47 {offsets = [0, 16], sizes = [8, 8], strides = [1, 1]} : vector<8x32xf32> to vector<8x8xf32>
    %53 = vector.shape_cast %52 : vector<8x8xf32> to vector<1x8x8xf32>
    %54 = vector.extract_strided_slice %47 {offsets = [0, 24], sizes = [8, 8], strides = [1, 1]} : vector<8x32xf32> to vector<8x8xf32>
    %55 = vector.shape_cast %54 : vector<8x8xf32> to vector<1x8x8xf32>
    %56 = vector.shape_cast %49 : vector<1x8x8xf32> to vector<1x1x8x8xf32>
    %57 = vector.shape_cast %51 : vector<1x8x8xf32> to vector<1x1x8x8xf32>
    %58 = vector.shape_cast %53 : vector<1x8x8xf32> to vector<1x1x8x8xf32>
    %59 = vector.shape_cast %55 : vector<1x8x8xf32> to vector<1x1x8x8xf32>
    %60 = tpu.concatenate %56, %57, %58, %59 in 0 : vector<1x1x8x8xf32>, vector<1x1x8x8xf32>, vector<1x1x8x8xf32>, vector<1x1x8x8xf32> -> vector<4x1x8x8xf32>
    %61 = vector.shape_cast %60 : vector<4x1x8x8xf32> to vector<4x8x8xf32>
    %62 = vector.extract_strided_slice %29 {offsets = [0, 64], sizes = [8, 32], strides = [1, 1]} : vector<8x96xf32> to vector<8x32xf32>
    %63 = vector.extract_strided_slice %62 {offsets = [0, 0], sizes = [8, 8], strides = [1, 1]} : vector<8x32xf32> to vector<8x8xf32>
    %64 = vector.shape_cast %63 : vector<8x8xf32> to vector<1x8x8xf32>
    %65 = vector.extract_strided_slice %62 {offsets = [0, 8], sizes = [8, 8], strides = [1, 1]} : vector<8x32xf32> to vector<8x8xf32>
    %66 = vector.shape_cast %65 : vector<8x8xf32> to vector<1x8x8xf32>
    %67 = vector.extract_strided_slice %62 {offsets = [0, 16], sizes = [8, 8], strides = [1, 1]} : vector<8x32xf32> to vector<8x8xf32>
    %68 = vector.shape_cast %67 : vector<8x8xf32> to vector<1x8x8xf32>
    %69 = vector.extract_strided_slice %62 {offsets = [0, 24], sizes = [8, 8], strides = [1, 1]} : vector<8x32xf32> to vector<8x8xf32>
    %70 = vector.shape_cast %69 : vector<8x8xf32> to vector<1x8x8xf32>
    %71 = vector.shape_cast %64 : vector<1x8x8xf32> to vector<1x1x8x8xf32>
    %72 = vector.shape_cast %66 : vector<1x8x8xf32> to vector<1x1x8x8xf32>
    %73 = vector.shape_cast %68 : vector<1x8x8xf32> to vector<1x1x8x8xf32>
    %74 = vector.shape_cast %70 : vector<1x8x8xf32> to vector<1x1x8x8xf32>
    %75 = tpu.concatenate %71, %72, %73, %74 in 0 : vector<1x1x8x8xf32>, vector<1x1x8x8xf32>, vector<1x1x8x8xf32>, vector<1x1x8x8xf32> -> vector<4x1x8x8xf32>
    %76 = vector.shape_cast %75 : vector<4x1x8x8xf32> to vector<4x8x8xf32>
    %77 = arith.truncf %46 : vector<4x8x8xf32> to vector<4x8x8xbf16>
    %78 = arith.truncf %61 : vector<4x8x8xf32> to vector<4x8x8xbf16>
    "tpu.trace_start"() <{level = 10 : i32, message = "gqd,gkd->gqk"}> : () -> ()
    %cst_16 = arith.constant dense<0.000000e+00> : vector<4x8x8xf32>
    %79 = tpu.matmul %77, %78, %cst_16 {dimension_numbers = #tpu.dot_dimension_numbers<[2], [2], [1], [1], [0, 0, 0, 1, 1, 1], [0], [0]>} : vector<4x8x8xbf16>, vector<4x8x8xbf16>, vector<4x8x8xf32> -> vector<4x8x8xf32>
    "tpu.trace_stop"() : () -> ()
    %80 = tpu.iota {dimensions = array<i32: 1>} : vector<4x8x8xi32>
    %81 = tpu.iota {dimensions = array<i32: 2>} : vector<4x8x8xi32>
    %82 = arith.cmpi sgt, %81, %80 : vector<4x8x8xi32>
    %cst_17 = arith.constant -1.000000e+30 : f32
    %83 = vector.broadcast %cst_17 : f32 to vector<4x8x8xf32>
    %84 = arith.select %82, %83, %79 : vector<4x8x8xi1>, vector<4x8x8xf32>
    %cst_18 = arith.constant dense<0xFF800000> : vector<4x8xf32>
    %85 = vector.multi_reduction <maximumf>, %84, %cst_18 [2] : vector<4x8x8xf32> to vector<4x8xf32>
    %86 = vector.shape_cast %85 : vector<4x8xf32> to vector<4x8x1xf32>
    %87 = vector.broadcast %86 : vector<4x8x1xf32> to vector<4x8x8xf32>
    %88 = arith.subf %84, %87 : vector<4x8x8xf32>
    %89 = math.exp %88 : vector<4x8x8xf32>
    %cst_19 = arith.constant dense<0.000000e+00> : vector<4x8xf32>
    %90 = vector.multi_reduction <add>, %89, %cst_19 [2] : vector<4x8x8xf32> to vector<4x8xf32>
    %91 = vector.shape_cast %90 : vector<4x8xf32> to vector<4x8x1xf32>
    %92 = tpu.reciprocal %91 {approx = true} : vector<4x8x1xf32> -> vector<4x8x1xf32>
    %93 = vector.broadcast %92 : vector<4x8x1xf32> to vector<4x8x8xf32>
    %94 = arith.mulf %89, %93 : vector<4x8x8xf32>
    %95 = arith.truncf %94 : vector<4x8x8xf32> to vector<4x8x8xbf16>
    %96 = arith.truncf %76 : vector<4x8x8xf32> to vector<4x8x8xbf16>
    "tpu.trace_start"() <{level = 10 : i32, message = "gqk,gkd->gqd"}> : () -> ()
    %cst_20 = arith.constant dense<0.000000e+00> : vector<4x8x8xf32>
    %97 = tpu.matmul %95, %96, %cst_20 {dimension_numbers = #tpu.dot_dimension_numbers<[2], [1], [1], [2], [0, 0, 0, 1, 1, 2], [0], [0]>} : vector<4x8x8xbf16>, vector<4x8x8xbf16>, vector<4x8x8xf32> -> vector<4x8x8xf32>
    "tpu.trace_stop"() : () -> ()
    %98 = vector.shape_cast %97 : vector<4x8x8xf32> to vector<4x1x8x8xf32>
    %99 = vector.extract_strided_slice %98 {offsets = [0, 0, 0, 0], sizes = [1, 1, 8, 8], strides = [1, 1, 1, 1]} : vector<4x1x8x8xf32> to vector<1x1x8x8xf32>
    %100 = vector.shape_cast %99 : vector<1x1x8x8xf32> to vector<1x8x8xf32>
    %101 = vector.shape_cast %100 : vector<1x8x8xf32> to vector<8x8xf32>
    %102 = vector.extract_strided_slice %98 {offsets = [1, 0, 0, 0], sizes = [1, 1, 8, 8], strides = [1, 1, 1, 1]} : vector<4x1x8x8xf32> to vector<1x1x8x8xf32>
    %103 = vector.shape_cast %102 : vector<1x1x8x8xf32> to vector<1x8x8xf32>
    %104 = vector.shape_cast %103 : vector<1x8x8xf32> to vector<8x8xf32>
    %105 = vector.extract_strided_slice %98 {offsets = [2, 0, 0, 0], sizes = [1, 1, 8, 8], strides = [1, 1, 1, 1]} : vector<4x1x8x8xf32> to vector<1x1x8x8xf32>
    %106 = vector.shape_cast %105 : vector<1x1x8x8xf32> to vector<1x8x8xf32>
    %107 = vector.shape_cast %106 : vector<1x8x8xf32> to vector<8x8xf32>
    %108 = vector.extract_strided_slice %98 {offsets = [3, 0, 0, 0], sizes = [1, 1, 8, 8], strides = [1, 1, 1, 1]} : vector<4x1x8x8xf32> to vector<1x1x8x8xf32>
    %109 = vector.shape_cast %108 : vector<1x1x8x8xf32> to vector<1x8x8xf32>
    %110 = vector.shape_cast %109 : vector<1x8x8xf32> to vector<8x8xf32>
    %111 = tpu.concatenate %101, %104, %107, %110 in 1 : vector<8x8xf32>, vector<8x8xf32>, vector<8x8xf32>, vector<8x8xf32> -> vector<8x32xf32>
    %112 = arith.truncf %111 : vector<8x32xf32> to vector<8x32xbf16>
    %c0_21 = arith.constant 0 : index
    %c0_22 = arith.constant 0 : index
    %113 = vector.load %arg6[%c0_21, %c0_22] : memref<32x32xbf16, #tpu.memory_space<vmem>>, vector<32x32xbf16>
    %cst_23 = arith.constant dense<0.000000e+00> : vector<8x32xf32>
    %114 = tpu.matmul %112, %113, %cst_23 {dimension_numbers = #tpu.dot_dimension_numbers<[1], [0], [0], [1], [0, 0, 1, 1], [], []>} : vector<8x32xbf16>, vector<32x32xbf16>, vector<8x32xf32> -> vector<8x32xf32>
    %c0_24 = arith.constant 0 : index
    %c0_25 = arith.constant 0 : index
    %115 = vector.load %arg7[%c0_24, %c0_25] : memref<1x32xf32, #tpu.memory_space<vmem>>, vector<1x32xf32>
    %116 = vector.broadcast %115 : vector<1x32xf32> to vector<8x32xf32>
    %117 = arith.addf %114, %116 : vector<8x32xf32>
    %118 = arith.addf %1, %117 : vector<8x32xf32>
    %cst_26 = arith.constant dense<0.000000e+00> : vector<8xf32>
    %119 = vector.multi_reduction <add>, %118, %cst_26 [1] : vector<8x32xf32> to vector<8xf32>
    %120 = vector.shape_cast %119 : vector<8xf32> to vector<8x1xf32>
    %cst_27 = arith.constant 3.200000e+01 : f32
    %121 = vector.broadcast %cst_27 : f32 to vector<8x1xf32>
    %122 = arith.divf %120, %121 : vector<8x1xf32>
    %123 = vector.broadcast %122 : vector<8x1xf32> to vector<8x32xf32>
    %124 = arith.subf %118, %123 : vector<8x32xf32>
    %125 = arith.mulf %124, %124 : vector<8x32xf32>
    %cst_28 = arith.constant dense<0.000000e+00> : vector<8xf32>
    %126 = vector.multi_reduction <add>, %125, %cst_28 [1] : vector<8x32xf32> to vector<8xf32>
    %127 = vector.shape_cast %126 : vector<8xf32> to vector<8x1xf32>
    %cst_29 = arith.constant 3.200000e+01 : f32
    %128 = vector.broadcast %cst_29 : f32 to vector<8x1xf32>
    %129 = arith.divf %127, %128 : vector<8x1xf32>
    %cst_30 = arith.constant 9.99999974E-6 : f32
    %130 = vector.broadcast %cst_30 : f32 to vector<8x1xf32>
    %131 = arith.addf %129, %130 : vector<8x1xf32>
    %132 = math.rsqrt %131 : vector<8x1xf32>
    %133 = vector.broadcast %132 : vector<8x1xf32> to vector<8x32xf32>
    %134 = arith.mulf %124, %133 : vector<8x32xf32>
    %c0_31 = arith.constant 0 : index
    %c0_32 = arith.constant 0 : index
    %135 = vector.load %arg8[%c0_31, %c0_32] : memref<1x32xf32, #tpu.memory_space<vmem>>, vector<1x32xf32>
    %136 = vector.broadcast %135 : vector<1x32xf32> to vector<8x32xf32>
    %137 = arith.mulf %134, %136 : vector<8x32xf32>
    %c0_33 = arith.constant 0 : index
    %c0_34 = arith.constant 0 : index
    %138 = vector.load %arg9[%c0_33, %c0_34] : memref<1x32xf32, #tpu.memory_space<vmem>>, vector<1x32xf32>
    %139 = vector.broadcast %138 : vector<1x32xf32> to vector<8x32xf32>
    %140 = arith.addf %137, %139 : vector<8x32xf32>
    %141 = arith.truncf %140 : vector<8x32xf32> to vector<8x32xbf16>
    %c0_35 = arith.constant 0 : index
    %c0_36 = arith.constant 0 : index
    %142 = vector.load %arg10[%c0_35, %c0_36] : memref<32x128xbf16, #tpu.memory_space<vmem>>, vector<32x128xbf16>
    %cst_37 = arith.constant dense<0.000000e+00> : vector<8x128xf32>
    %143 = tpu.matmul %141, %142, %cst_37 {dimension_numbers = #tpu.dot_dimension_numbers<[1], [0], [0], [1], [0, 0, 1, 1], [], []>} : vector<8x32xbf16>, vector<32x128xbf16>, vector<8x128xf32> -> vector<8x128xf32>
    %c0_38 = arith.constant 0 : index
    %c0_39 = arith.constant 0 : index
    %144 = vector.load %arg11[%c0_38, %c0_39] : memref<1x128xf32, #tpu.memory_space<vmem>>, vector<1x128xf32>
    %145 = vector.broadcast %144 : vector<1x128xf32> to vector<8x128xf32>
    %146 = arith.addf %143, %145 : vector<8x128xf32>
    %cst_40 = arith.constant 1.702000e+00 : f32
    %147 = vector.broadcast %cst_40 : f32 to vector<8x128xf32>
    %148 = arith.mulf %147, %146 : vector<8x128xf32>
    %149 = arith.negf %148 : vector<8x128xf32>
    %150 = math.exp %149 : vector<8x128xf32>
    %cst_41 = arith.constant 1.000000e+00 : f32
    %151 = vector.broadcast %cst_41 : f32 to vector<8x128xf32>
    %152 = arith.addf %151, %150 : vector<8x128xf32>
    %153 = arith.divf %151, %152 : vector<8x128xf32>
    %154 = arith.mulf %146, %153 : vector<8x128xf32>
    %155 = arith.truncf %154 : vector<8x128xf32> to vector<8x128xbf16>
    %c0_42 = arith.constant 0 : index
    %c0_43 = arith.constant 0 : index
    %156 = vector.load %arg12[%c0_42, %c0_43] : memref<128x32xbf16, #tpu.memory_space<vmem>>, vector<128x32xbf16>
    %cst_44 = arith.constant dense<0.000000e+00> : vector<8x32xf32>
    %157 = tpu.matmul %155, %156, %cst_44 {dimension_numbers = #tpu.dot_dimension_numbers<[1], [0], [0], [1], [0, 0, 1, 1], [], []>} : vector<8x128xbf16>, vector<128x32xbf16>, vector<8x32xf32> -> vector<8x32xf32>
    %c0_45 = arith.constant 0 : index
    %c0_46 = arith.constant 0 : index
    %158 = vector.load %arg13[%c0_45, %c0_46] : memref<1x32xf32, #tpu.memory_space<vmem>>, vector<1x32xf32>
    %159 = vector.broadcast %158 : vector<1x32xf32> to vector<8x32xf32>
    %160 = arith.addf %157, %159 : vector<8x32xf32>
    %161 = arith.addf %118, %160 : vector<8x32xf32>
    %162 = vector.shape_cast %161 : vector<8x32xf32> to vector<1x8x32xf32>
    %c0_47 = arith.constant 0 : index
    %c0_48 = arith.constant 0 : index
    %c0_49 = arith.constant 0 : index
    %163 = vector.load %arg14[%c0_47, %c0_48, %c0_49] : memref<1x8x32xf32, #tpu.memory_space<vmem>>, vector<1x8x32xf32>
    tpu.vector_store %arg14[%c0_47, %c0_48, %c0_49], %162 {strides = array<i32>} : memref<1x8x32xf32, #tpu.memory_space<vmem>>, vector<1x8x32xf32>,
    return
  }
  func.func @transform_0(%arg0: i32) -> (i32, i32, i32) {
    %c0_i32 = arith.constant 0 : i32
    %c0_i32_0 = arith.constant 0 : i32
    %c0_i32_1 = arith.constant 0 : i32
    return %arg0, %c0_i32, %c0_i32_0 : i32, i32, i32
  }
  func.func @transform_1(%arg0: i32) -> (i32, i32) {
    %c0_i32 = arith.constant 0 : i32
    %c0_i32_0 = arith.constant 0 : i32
    %c0_i32_1 = arith.constant 0 : i32
    return %c0_i32, %c0_i32_0 : i32, i32
  }
  func.func @transform_2(%arg0: i32) -> (i32, i32) {
    %c0_i32 = arith.constant 0 : i32
    %c0_i32_0 = arith.constant 0 : i32
    %c0_i32_1 = arith.constant 0 : i32
    return %c0_i32, %c0_i32_0 : i32, i32
  }
  func.func @transform_3(%arg0: i32) -> (i32, i32) {
    %c0_i32 = arith.constant 0 : i32
    %c0_i32_0 = arith.constant 0 : i32
    %c0_i32_1 = arith.constant 0 : i32
    return %c0_i32, %c0_i32_0 : i32, i32
  }
  func.func @transform_4(%arg0: i32) -> (i32, i32) {
    %c0_i32 = arith.constant 0 : i32
    %c0_i32_0 = arith.constant 0 : i32
    %c0_i32_1 = arith.constant 0 : i32
    return %c0_i32, %c0_i32_0 : i32, i32
  }
  func.func @transform_5(%arg0: i32) -> (i32, i32) {
    %c0_i32 = arith.constant 0 : i32
    %c0_i32_0 = arith.constant 0 : i32
    %c0_i32_1 = arith.constant 0 : i32
    return %c0_i32, %c0_i32_0 : i32, i32
  }
  func.func @transform_6(%arg0: i32) -> (i32, i32) {
    %c0_i32 = arith.constant 0 : i32
    %c0_i32_0 = arith.constant 0 : i32
    %c0_i32_1 = arith.constant 0 : i32
    return %c0_i32, %c0_i32_0 : i32, i32
  }
  func.func @transform_7(%arg0: i32) -> (i32, i32) {
    %c0_i32 = arith.constant 0 : i32
    %c0_i32_0 = arith.constant 0 : i32
    %c0_i32_1 = arith.constant 0 : i32
    return %c0_i32, %c0_i32_0 : i32, i32
  }
  func.func @transform_8(%arg0: i32) -> (i32, i32) {
    %c0_i32 = arith.constant 0 : i32
    %c0_i32_0 = arith.constant 0 : i32
    %c0_i32_1 = arith.constant 0 : i32
    return %c0_i32, %c0_i32_0 : i32, i32
  }
  func.func @transform_9(%arg0: i32) -> (i32, i32) {
    %c0_i32 = arith.constant 0 : i32
    %c0_i32_0 = arith.constant 0 : i32
    %c0_i32_1 = arith.constant 0 : i32
    return %c0_i32, %c0_i32_0 : i32, i32
  }
  func.func @transform_10(%arg0: i32) -> (i32, i32) {
    %c0_i32 = arith.constant 0 : i32
    %c0_i32_0 = arith.constant 0 : i32
    %c0_i32_1 = arith.constant 0 : i32
    return %c0_i32, %c0_i32_0 : i32, i32
  }
  func.func @transform_11(%arg0: i32) -> (i32, i32) {
    %c0_i32 = arith.constant 0 : i32
    %c0_i32_0 = arith.constant 0 : i32
    %c0_i32_1 = arith.constant 0 : i32
    return %c0_i32, %c0_i32_0 : i32, i32
  }
  func.func @transform_12(%arg0: i32) -> (i32, i32) {
    %c0_i32 = arith.constant 0 : i32
    %c0_i32_0 = arith.constant 0 : i32
    %c0_i32_1 = arith.constant 0 : i32
    return %c0_i32, %c0_i32_0 : i32, i32
  }
  func.func @transform_13(%arg0: i32) -> (i32, i32, i32) {
    %c0_i32 = arith.constant 0 : i32
    %c0_i32_0 = arith.constant 0 : i32
    %c0_i32_1 = arith.constant 0 : i32
    return %arg0, %c0_i32, %c0_i32_0 : i32, i32, i32
  }
}

</mosaic_0001>

<llo_original>
// kernel: tpu_custom_call.1
$region0: #{tpu_custom_call.1}
  #allocation0 [shape = 'u32[]', space=smem, size = 0x4, offset = 0x4, fixed_abs, tag = 'smem constant byte address 0x4 - core index']
  #allocation1 [shape = 'u32[144,128]{1,0:T(1,128)}', space=vmem, size = 0x12000, scoped, tag = 'internal scratch']
  %s0 = inlined_call_operand.vmem [shape: f32[2,8,32], index: 0, kind: input, shape index: {}]
  %s1 = inlined_call_operand.vmem [shape: f32[1,32], index: 1, kind: input, shape index: {}]
  %s2 = inlined_call_operand.vmem [shape: f32[1,32], index: 2, kind: input, shape index: {}]
  %s3 = inlined_call_operand.vmem [shape: bf16[32,96], index: 3, kind: input, shape index: {}]
  %s4 = inlined_call_operand.vmem [shape: f32[1,96], index: 4, kind: input, shape index: {}]
  %s5 = inlined_call_operand.vmem [shape: bf16[32,32], index: 5, kind: input, shape index: {}]
  %s6 = inlined_call_operand.vmem [shape: f32[1,32], index: 6, kind: input, shape index: {}]
  %s7 = inlined_call_operand.vmem [shape: f32[1,32], index: 7, kind: input, shape index: {}]
  %s8 = inlined_call_operand.vmem [shape: f32[1,32], index: 8, kind: input, shape index: {}]
  %s9 = inlined_call_operand.vmem [shape: bf16[32,128], index: 9, kind: input, shape index: {}]
  %s10 = inlined_call_operand.vmem [shape: f32[1,128], index: 10, kind: input, shape index: {}]
  %s11 = inlined_call_operand.vmem [shape: bf16[128,32], index: 11, kind: input, shape index: {}]
  %s12 = inlined_call_operand.vmem [shape: f32[1,32], index: 12, kind: input, shape index: {}]
  %s13 = inlined_call_operand.hbm [shape: f32[2,8,32], index: 13, kind: output, shape index: {}]
  %s14 = sld [smem:[#allocation0]]
  $region85: #{tpu_custom_call.1} parent=0
    _
  %s16 = ssub.s32 1, %s14
  %s17 = scalar_select 0, %s16, %s14
  $region1: #{tpu_custom_call.1} parent=0
    #allocation2 [shape = 'u8[8192]{0}', space=vmem, size = 0x2000, scoped, tag = 'output window, operand 0']
    #allocation3 [shape = 's32[2]{0}', space=sflag, size = 0x8, scoped, tag = 'scoped memory for tpu_custom_call.1']
    %18 = vsyncpa [#allocation3], 0
    %s19 = scalar_lea.sflag [#allocation3], 1
    %20 = vsyncpa %s19, 0
    loop: start=0, step=1, limit=4
    $region2: #{tpu_custom_call.1} parent=1 // loop_pre_header
      _
    $region3: #{tpu_custom_call.1} parent=1 // loop_header
      %s22 = sphi 0, %s26
      %p23 = scmp.ge.s32.totalorder %s22, 4
      %s32 = sphi 0, %s34
      %s35 = sphi 0, %s32
      %s36 = sphi 0, %s35
      %s52 = sphi 0, %s36
      %s56 = sphi 0, %s56
      %s58 = sphi 0, %s56
      %s59 = sphi 0, %s58
      %s73 = sphi 0, %s59
      %s77 = sphi 0, %s77
      %s79 = sphi 0, %s77
      %s80 = sphi 0, %s79
      %s94 = sphi 0, %s80
      %s98 = sphi 0, %s98
      %s100 = sphi 0, %s98
      %s101 = sphi 0, %s100
      %s115 = sphi 0, %s101
      %s119 = sphi 0, %s119
      %s121 = sphi 0, %s119
      %s122 = sphi 0, %s121
      %s136 = sphi 0, %s122
      %s140 = sphi 0, %s140
      %s142 = sphi 0, %s140
      %s143 = sphi 0, %s142
      %s157 = sphi 0, %s143
      %s161 = sphi 0, %s161
      %s163 = sphi 0, %s161
      %s164 = sphi 0, %s163
      %s178 = sphi 0, %s164
      %s182 = sphi 0, %s182
      %s184 = sphi 0, %s182
      %s185 = sphi 0, %s184
      %s199 = sphi 0, %s185
      %s203 = sphi 0, %s203
      %s205 = sphi 0, %s203
      %s206 = sphi 0, %s205
      %s220 = sphi 0, %s206
      %s224 = sphi 0, %s224
      %s226 = sphi 0, %s224
      %s227 = sphi 0, %s226
      %s241 = sphi 0, %s227
      %s245 = sphi 0, %s245
      %s247 = sphi 0, %s245
      %s248 = sphi 0, %s247
      %s262 = sphi 0, %s248
      %s266 = sphi 0, %s266
      %s268 = sphi 0, %s266
      %s269 = sphi 0, %s268
      %s283 = sphi 0, %s269
      %s287 = sphi 0, %s287
      %s289 = sphi 0, %s287
      %s290 = sphi 0, %s289
      %s304 = sphi 0, %s290
      %s310 = sphi 0, %s312
      %s313 = sphi 0, %s310
      %s314 = sphi 0, %s313
      %s330 = sphi 0, %s314
    $region4: #{tpu_custom_call.1} parent=1 // loop_header_branch
      %25 = sbr.rel (%p23) target = $region8
    $region5: #{tpu_custom_call.1} parent=1 // loop_body
      %s27 = ssub.s32 %s22, 1
      %s28 = ssub.s32 %s22, 2
      %s29 = sadd.s32 %s22, 1
      %s30 = ssub.s32 %s22, %s29
      %p31 = scmp.eq.s32.totalorder %s30, 0
      %s33 = sadd.s32 %s32, 1
      %s34 = scalar_select %p31, %s32, %s33
      %p37 = pneg %p31
      %p38 = scmp.eq.s32.totalorder %s22, 1
      %p39 = por %p37, %p38
      %p40 = scmp.ne.s32.totalorder %s32, %s35
      %p41 = scmp.eq.s32.totalorder %s22, 0
      %p42 = por %p40, %p41
      %p43 = scmp.ne.s32.totalorder %s32, %s35
      %p44 = scmp.eq.s32.totalorder %s27, 1
      %p45 = por %p43, %p44
      %p46 = scmp.ne.s32.totalorder %s35, %s36
      %p47 = scmp.eq.s32.totalorder %s27, 0
      %p48 = por %p46, %p47
      %p49 = scmp.ne.s32.totalorder %s35, %s36
      %p50 = scmp.eq.s32.totalorder %s28, 1
      %p51 = por %p49, %p50
      %p53 = scmp.ne.s32.totalorder %s36, %s52
      %p54 = scmp.eq.s32.totalorder %s28, 0
      %p55 = por %p53, %p54
      %s57 = sadd.s32 %s56, 1
      %p60 = scmp.eq.s32.totalorder %s22, 1
      %p61 = scmp.ne.s32.totalorder %s56, %s58
      %p62 = scmp.eq.s32.totalorder %s22, 0
      %p63 = por %p61, %p62
      %p64 = scmp.ne.s32.totalorder %s56, %s58
      %p65 = scmp.eq.s32.totalorder %s27, 1
      %p66 = por %p64, %p65
      %p67 = scmp.ne.s32.totalorder %s58, %s59
      %p68 = scmp.eq.s32.totalorder %s27, 0
      %p69 = por %p67, %p68
      %p70 = scmp.ne.s32.totalorder %s58, %s59
      %p71 = scmp.eq.s32.totalorder %s28, 1
      %p72 = por %p70, %p71
      %p74 = scmp.ne.s32.totalorder %s59, %s73
      %p75 = scmp.eq.s32.totalorder %s28, 0
      %p76 = por %p74, %p75
      %s78 = sadd.s32 %s77, 1
      %p81 = scmp.eq.s32.totalorder %s22, 1
      %p82 = scmp.ne.s32.totalorder %s77, %s79
      %p83 = scmp.eq.s32.totalorder %s22, 0
      %p84 = por %p82, %p83
      %p85 = scmp.ne.s32.totalorder %s77, %s79
      %p86 = scmp.eq.s32.totalorder %s27, 1
      %p87 = por %p85, %p86
      %p88 = scmp.ne.s32.totalorder %s79, %s80
      %p89 = scmp.eq.s32.totalorder %s27, 0
      %p90 = por %p88, %p89
      %p91 = scmp.ne.s32.totalorder %s79, %s80
      %p92 = scmp.eq.s32.totalorder %s28, 1
      %p93 = por %p91, %p92
      %p95 = scmp.ne.s32.totalorder %s80, %s94
      %p96 = scmp.eq.s32.totalorder %s28, 0
      %p97 = por %p95, %p96
      %s99 = sadd.s32 %s98, 1
      %p102 = scmp.eq.s32.totalorder %s22, 1
      %p103 = scmp.ne.s32.totalorder %s98, %s100
      %p104 = scmp.eq.s32.totalorder %s22, 0
      %p105 = por %p103, %p104
      %p106 = scmp.ne.s32.totalorder %s98, %s100
      %p107 = scmp.eq.s32.totalorder %s27, 1
      %p108 = por %p106, %p107
      %p109 = scmp.ne.s32.totalorder %s100, %s101
      %p110 = scmp.eq.s32.totalorder %s27, 0
      %p111 = por %p109, %p110
      %p112 = scmp.ne.s32.totalorder %s100, %s101
      %p113 = scmp.eq.s32.totalorder %s28, 1
      %p114 = por %p112, %p113
      %p116 = scmp.ne.s32.totalorder %s101, %s115
      %p117 = scmp.eq.s32.totalorder %s28, 0
      %p118 = por %p116, %p117
      %s120 = sadd.s32 %s119, 1
      %p123 = scmp.eq.s32.totalorder %s22, 1
      %p124 = scmp.ne.s32.totalorder %s119, %s121
      %p125 = scmp.eq.s32.totalorder %s22, 0
      %p126 = por %p124, %p125
      %p127 = scmp.ne.s32.totalorder %s119, %s121
      %p128 = scmp.eq.s32.totalorder %s27, 1
      %p129 = por %p127, %p128
      %p130 = scmp.ne.s32.totalorder %s121, %s122
      %p131 = scmp.eq.s32.totalorder %s27, 0
      %p132 = por %p130, %p131
      %p133 = scmp.ne.s32.totalorder %s121, %s122
      %p134 = scmp.eq.s32.totalorder %s28, 1
      %p135 = por %p133, %p134
      %p137 = scmp.ne.s32.totalorder %s122, %s136
      %p138 = scmp.eq.s32.totalorder %s28, 0
      %p139 = por %p137, %p138
      %s141 = sadd.s32 %s140, 1
      %p144 = scmp.eq.s32.totalorder %s22, 1
      %p145 = scmp.ne.s32.totalorder %s140, %s142
      %p146 = scmp.eq.s32.totalorder %s22, 0
      %p147 = por %p145, %p146
      %p148 = scmp.ne.s32.totalorder %s140, %s142
      %p149 = scmp.eq.s32.totalorder %s27, 1
      %p150 = por %p148, %p149
      %p151 = scmp.ne.s32.totalorder %s142, %s143
      %p152 = scmp.eq.s32.totalorder %s27, 0
      %p153 = por %p151, %p152
      %p154 = scmp.ne.s32.totalorder %s142, %s143
      %p155 = scmp.eq.s32.totalorder %s28, 1
      %p156 = por %p154, %p155
      %p158 = scmp.ne.s32.totalorder %s143, %s157
      %p159 = scmp.eq.s32.totalorder %s28, 0
      %p160 = por %p158, %p159
      %s162 = sadd.s32 %s161, 1
      %p165 = scmp.eq.s32.totalorder %s22, 1
      %p166 = scmp.ne.s32.totalorder %s161, %s163
      %p167 = scmp.eq.s32.totalorder %s22, 0
      %p168 = por %p166, %p167
      %p169 = scmp.ne.s32.totalorder %s161, %s163
      %p170 = scmp.eq.s32.totalorder %s27, 1
      %p171 = por %p169, %p170
      %p172 = scmp.ne.s32.totalorder %s163, %s164
      %p173 = scmp.eq.s32.totalorder %s27, 0
      %p174 = por %p172, %p173
      %p175 = scmp.ne.s32.totalorder %s163, %s164
      %p176 = scmp.eq.s32.totalorder %s28, 1
      %p177 = por %p175, %p176
      %p179 = scmp.ne.s32.totalorder %s164, %s178
      %p180 = scmp.eq.s32.totalorder %s28, 0
      %p181 = por %p179, %p180
      %s183 = sadd.s32 %s182, 1
      %p186 = scmp.eq.s32.totalorder %s22, 1
      %p187 = scmp.ne.s32.totalorder %s182, %s184
      %p188 = scmp.eq.s32.totalorder %s22, 0
      %p189 = por %p187, %p188
      %p190 = scmp.ne.s32.totalorder %s182, %s184
      %p191 = scmp.eq.s32.totalorder %s27, 1
      %p192 = por %p190, %p191
      %p193 = scmp.ne.s32.totalorder %s184, %s185
      %p194 = scmp.eq.s32.totalorder %s27, 0
      %p195 = por %p193, %p194
      %p196 = scmp.ne.s32.totalorder %s184, %s185
      %p197 = scmp.eq.s32.totalorder %s28, 1
      %p198 = por %p196, %p197
      %p200 = scmp.ne.s32.totalorder %s185, %s199
      %p201 = scmp.eq.s32.totalorder %s28, 0
      %p202 = por %p200, %p201
      %s204 = sadd.s32 %s203, 1
      %p207 = scmp.eq.s32.totalorder %s22, 1
      %p208 = scmp.ne.s32.totalorder %s203, %s205
      %p209 = scmp.eq.s32.totalorder %s22, 0
      %p210 = por %p208, %p209
      %p211 = scmp.ne.s32.totalorder %s203, %s205
      %p212 = scmp.eq.s32.totalorder %s27, 1
      %p213 = por %p211, %p212
      %p214 = scmp.ne.s32.totalorder %s205, %s206
      %p215 = scmp.eq.s32.totalorder %s27, 0
      %p216 = por %p214, %p215
      %p217 = scmp.ne.s32.totalorder %s205, %s206
      %p218 = scmp.eq.s32.totalorder %s28, 1
      %p219 = por %p217, %p218
      %p221 = scmp.ne.s32.totalorder %s206, %s220
      %p222 = scmp.eq.s32.totalorder %s28, 0
      %p223 = por %p221, %p222
      %s225 = sadd.s32 %s224, 1
      %p228 = scmp.eq.s32.totalorder %s22, 1
      %p229 = scmp.ne.s32.totalorder %s224, %s226
      %p230 = scmp.eq.s32.totalorder %s22, 0
      %p231 = por %p229, %p230
      %p232 = scmp.ne.s32.totalorder %s224, %s226
      %p233 = scmp.eq.s32.totalorder %s27, 1
      %p234 = por %p232, %p233
      %p235 = scmp.ne.s32.totalorder %s226, %s227
      %p236 = scmp.eq.s32.totalorder %s27, 0
      %p237 = por %p235, %p236
      %p238 = scmp.ne.s32.totalorder %s226, %s227
      %p239 = scmp.eq.s32.totalorder %s28, 1
      %p240 = por %p238, %p239
      %p242 = scmp.ne.s32.totalorder %s227, %s241
      %p243 = scmp.eq.s32.totalorder %s28, 0
      %p244 = por %p242, %p243
      %s246 = sadd.s32 %s245, 1
      %p249 = scmp.eq.s32.totalorder %s22, 1
      %p250 = scmp.ne.s32.totalorder %s245, %s247
      %p251 = scmp.eq.s32.totalorder %s22, 0
      %p252 = por %p250, %p251
      %p253 = scmp.ne.s32.totalorder %s245, %s247
      %p254 = scmp.eq.s32.totalorder %s27, 1
      %p255 = por %p253, %p254
      %p256 = scmp.ne.s32.totalorder %s247, %s248
      %p257 = scmp.eq.s32.totalorder %s27, 0
      %p258 = por %p256, %p257
      %p259 = scmp.ne.s32.totalorder %s247, %s248
      %p260 = scmp.eq.s32.totalorder %s28, 1
      %p261 = por %p259, %p260
      %p263 = scmp.ne.s32.totalorder %s248, %s262
      %p264 = scmp.eq.s32.totalorder %s28, 0
      %p265 = por %p263, %p264
      %s267 = sadd.s32 %s266, 1
      %p270 = scmp.eq.s32.totalorder %s22, 1
      %p271 = scmp.ne.s32.totalorder %s266, %s268
      %p272 = scmp.eq.s32.totalorder %s22, 0
      %p273 = por %p271, %p272
      %p274 = scmp.ne.s32.totalorder %s266, %s268
      %p275 = scmp.eq.s32.totalorder %s27, 1
      %p276 = por %p274, %p275
      %p277 = scmp.ne.s32.totalorder %s268, %s269
      %p278 = scmp.eq.s32.totalorder %s27, 0
      %p279 = por %p277, %p278
      %p280 = scmp.ne.s32.totalorder %s268, %s269
      %p281 = scmp.eq.s32.totalorder %s28, 1
      %p282 = por %p280, %p281
      %p284 = scmp.ne.s32.totalorder %s269, %s283
      %p285 = scmp.eq.s32.totalorder %s28, 0
      %p286 = por %p284, %p285
      %s288 = sadd.s32 %s287, 1
      %p291 = scmp.eq.s32.totalorder %s22, 1
      %p292 = scmp.ne.s32.totalorder %s287, %s289
      %p293 = scmp.eq.s32.totalorder %s22, 0
      %p294 = por %p292, %p293
      %p295 = scmp.ne.s32.totalorder %s287, %s289
      %p296 = scmp.eq.s32.totalorder %s27, 1
      %p297 = por %p295, %p296
      %p298 = scmp.ne.s32.totalorder %s289, %s290
      %p299 = scmp.eq.s32.totalorder %s27, 0
      %p300 = por %p298, %p299
      %p301 = scmp.ne.s32.totalorder %s289, %s290
      %p302 = scmp.eq.s32.totalorder %s28, 1
      %p303 = por %p301, %p302
      %p305 = scmp.ne.s32.totalorder %s290, %s304
      %p306 = scmp.eq.s32.totalorder %s28, 0
      %p307 = por %p305, %p306
      %s308 = ssub.s32 %s22, %s29
      %p309 = scmp.eq.s32.totalorder %s308, 0
      %s311 = sadd.s32 %s310, 1
      %s312 = scalar_select %p309, %s310, %s311
      %p315 = pneg %p309
      %p316 = scmp.eq.s32.totalorder %s22, 1
      %p317 = por %p315, %p316
      %p318 = scmp.ne.s32.totalorder %s310, %s313
      %p319 = scmp.eq.s32.totalorder %s22, 0
      %p320 = por %p318, %p319
      %p321 = scmp.ne.s32.totalorder %s310, %s313
      %p322 = scmp.eq.s32.totalorder %s27, 1
      %p323 = por %p321, %p322
      %p324 = scmp.ne.s32.totalorder %s313, %s314
      %p325 = scmp.eq.s32.totalorder %s27, 0
      %p326 = por %p324, %p325
      %p327 = scmp.ne.s32.totalorder %s313, %s314
      %p328 = scmp.eq.s32.totalorder %s28, 1
      %p329 = por %p327, %p328
      %p331 = scmp.ne.s32.totalorder %s314, %s330
      %p332 = scmp.eq.s32.totalorder %s28, 0
      %p333 = por %p331, %p332
      %p334 = scmp.le.s32.totalorder 1, %s22
      %p335 = scmp.lt.s32.totalorder %s22, 3
      %p336 = pnand %p334, %p335
      %p337 = pneg %p336
      // Predicated region
      $region9: #{tpu_custom_call.1} parent=5 // pred_check
        _
      $region10: #{tpu_custom_call.1} parent=5 // pred_check_branch
        %339 = sbr.rel (%p336) target = $region12
      $region11: #{tpu_custom_call.1} parent=5 // pred_region
        %s340 = ssub.s32 %s22, 1
        // Predicated region
        $region13: #{tpu_custom_call.1} parent=11 // pred_check
          %p341 = pneg %p69
        $region14: #{tpu_custom_call.1} parent=11 // pred_check_branch
          %343 = sbr.rel (%p341) target = $region16
        $region15: #{tpu_custom_call.1} parent=11 // pred_region
          _
        $region16: #{tpu_custom_call.1} parent=11 // pred_fallthru
          _
        // Predicated region
        $region17: #{tpu_custom_call.1} parent=11 // pred_check
          %p344 = pneg %p90
        $region18: #{tpu_custom_call.1} parent=11 // pred_check_branch
          %346 = sbr.rel (%p344) target = $region20
        $region19: #{tpu_custom_call.1} parent=11 // pred_region
          _
        $region20: #{tpu_custom_call.1} parent=11 // pred_fallthru
          _
        // Predicated region
        $region21: #{tpu_custom_call.1} parent=11 // pred_check
          %p347 = pneg %p111
        $region22: #{tpu_custom_call.1} parent=11 // pred_check_branch
          %349 = sbr.rel (%p347) target = $region24
        $region23: #{tpu_custom_call.1} parent=11 // pred_region
          _
        $region24: #{tpu_custom_call.1} parent=11 // pred_fallthru
          _
        // Predicated region
        $region25: #{tpu_custom_call.1} parent=11 // pred_check
          %p350 = pneg %p132
        $region26: #{tpu_custom_call.1} parent=11 // pred_check_branch
          %352 = sbr.rel (%p350) target = $region28
        $region27: #{tpu_custom_call.1} parent=11 // pred_region
          _
        $region28: #{tpu_custom_call.1} parent=11 // pred_fallthru
          _
        // Predicated region
        $region29: #{tpu_custom_call.1} parent=11 // pred_check
          %p353 = pneg %p153
        $region30: #{tpu_custom_call.1} parent=11 // pred_check_branch
          %355 = sbr.rel (%p353) target = $region32
        $region31: #{tpu_custom_call.1} parent=11 // pred_region
          _
        $region32: #{tpu_custom_call.1} parent=11 // pred_fallthru
          _
        // Predicated region
        $region33: #{tpu_custom_call.1} parent=11 // pred_check
          %p356 = pneg %p174
        $region34: #{tpu_custom_call.1} parent=11 // pred_check_branch
          %358 = sbr.rel (%p356) target = $region36
        $region35: #{tpu_custom_call.1} parent=11 // pred_region
          _
        $region36: #{tpu_custom_call.1} parent=11 // pred_fallthru
          _
        // Predicated region
        $region37: #{tpu_custom_call.1} parent=11 // pred_check
          %p359 = pneg %p195
        $region38: #{tpu_custom_call.1} parent=11 // pred_check_branch
          %361 = sbr.rel (%p359) target = $region40
        $region39: #{tpu_custom_call.1} parent=11 // pred_region
          _
        $region40: #{tpu_custom_call.1} parent=11 // pred_fallthru
          _
        // Predicated region
        $region41: #{tpu_custom_call.1} parent=11 // pred_check
          %p362 = pneg %p216
        $region42: #{tpu_custom_call.1} parent=11 // pred_check_branch
          %364 = sbr.rel (%p362) target = $region44
        $region43: #{tpu_custom_call.1} parent=11 // pred_region
          _
        $region44: #{tpu_custom_call.1} parent=11 // pred_fallthru
          _
        // Predicated region
        $region45: #{tpu_custom_call.1} parent=11 // pred_check
          %p365 = pneg %p237
        $region46: #{tpu_custom_call.1} parent=11 // pred_check_branch
          %367 = sbr.rel (%p365) target = $region48
        $region47: #{tpu_custom_call.1} parent=11 // pred_region
          _
        $region48: #{tpu_custom_call.1} parent=11 // pred_fallthru
          _
        // Predicated region
        $region49: #{tpu_custom_call.1} parent=11 // pred_check
          %p368 = pneg %p258
        $region50: #{tpu_custom_call.1} parent=11 // pred_check_branch
          %370 = sbr.rel (%p368) target = $region52
        $region51: #{tpu_custom_call.1} parent=11 // pred_region
          _
        $region52: #{tpu_custom_call.1} parent=11 // pred_fallthru
          _
        // Predicated region
        $region53: #{tpu_custom_call.1} parent=11 // pred_check
          %p371 = pneg %p279
        $region54: #{tpu_custom_call.1} parent=11 // pred_check_branch
          %373 = sbr.rel (%p371) target = $region56
        $region55: #{tpu_custom_call.1} parent=11 // pred_region
          _
        $region56: #{tpu_custom_call.1} parent=11 // pred_fallthru
          _
        // Predicated region
        $region57: #{tpu_custom_call.1} parent=11 // pred_check
          %p374 = pneg %p300
        $region58: #{tpu_custom_call.1} parent=11 // pred_check_branch
          %376 = sbr.rel (%p374) target = $region60
        $region59: #{tpu_custom_call.1} parent=11 // pred_region
          _
        $region60: #{tpu_custom_call.1} parent=11 // pred_fallthru
          _
      $region12: #{tpu_custom_call.1} parent=5 // pred_fallthru
        _
      %p377 = scmp.lt.s32.totalorder %s22, 2
      // Predicated region
      $region61: #{tpu_custom_call.1} parent=5 // pred_check
        %p378 = pneg %p377
      $region62: #{tpu_custom_call.1} parent=5 // pred_check_branch
        %380 = sbr.rel (%p378) target = $region64
      $region63: #{tpu_custom_call.1} parent=5 // pred_region
        // Predicated region
        $region65: #{tpu_custom_call.1} parent=63 // pred_check
          %p381 = pneg %p42
        $region66: #{tpu_custom_call.1} parent=63 // pred_check_branch
          %383 = sbr.rel (%p381) target = $region68
        $region67: #{tpu_custom_call.1} parent=63 // pred_region
          %p384 = scmp.lt.s32.totalorder %s22, 1
          %s385 = scalar_select %p384, %s22, 1
          %s386 = smul.addr %s385, 8
          %s387 = scalar_lea.vmem %s0, %s386
        $region68: #{tpu_custom_call.1} parent=63 // pred_fallthru
          _
      $region64: #{tpu_custom_call.1} parent=5 // pred_fallthru
        _
      %p388 = scmp.le.s32.totalorder 1, %s22
      %p389 = scmp.lt.s32.totalorder %s22, 3
      %p390 = pnand %p388, %p389
      %p391 = pneg %p390
      // Predicated region
      $region69: #{tpu_custom_call.1} parent=5 // pred_check
        _
      $region70: #{tpu_custom_call.1} parent=5 // pred_check_branch
        %393 = sbr.rel (%p390) target = $region72
      $region71: #{tpu_custom_call.1} parent=5 // pred_region
        %s394 = ssub.s32 %s22, 1
        %p395 = scmp.lt.s32.totalorder %s27, 1
        %s396 = scalar_select %p395, %s27, 1
        %s397 = smul.addr %s396, 8
        %s398 = scalar_lea.vmem %s0, %s397
        %p399 = pneg %p48
        %p400 = pneg %p45
        %p401 = pneg %p69
        %p402 = pneg %p66
        %p403 = pneg %p90
        %p404 = pneg %p87
        %p405 = pneg %p111
        %p406 = pneg %p108
        %p407 = pneg %p132
        %p408 = pneg %p129
        %p409 = pneg %p153
        %p410 = pneg %p150
        %p411 = pneg %p174
        %p412 = pneg %p171
        %p413 = pneg %p195
        %p414 = pneg %p192
        %p415 = pneg %p216
        %p416 = pneg %p213
        %p417 = pneg %p237
        %p418 = pneg %p234
        %p419 = pneg %p258
        %p420 = pneg %p255
        %p421 = pneg %p279
        %p422 = pneg %p276
        %p423 = pneg %p300
        %p424 = pneg %p297
        %p425 = pneg %p326
        %p426 = pneg %p323
        %s427 = sand.u32 %s313, 1
        %s428 = scalar_lea.sflag [#allocation3], %s427
        %s429 = sand.u32 %s313, 1
        %s430 = smul.addr %s429, 8
        %s431 = scalar_lea.vmem [#allocation2], %s430
        %p432 = scmp.lt.s32.totalorder %s27, 1
        %s433 = scalar_select %p432, %s27, 1
        %s434 = smul.addr %s433, 8
        %s435 = scalar_lea.vmem %s0, %s434
        %v437 = vld [vmem:[%s435] sm:$0xff]
        %vm438 = vcmask 261120
        %v439 = vsel %vm438, %v437, 0.0
        %440 = vadd.xlane.f32.xlu0 %v439
        %v441 = vpop.xlane.xlu0 %440
        %v442 = vrcp.pop 32.0
        %v443 = vmul.f32 %v441, %v442
        %v444 = vsub.f32 %v437, %v443
        %v445 = vmul.f32 %v444, %v444
        %v446 = vsel %vm438, %v445, 0.0
        %447 = vadd.xlane.f32.xlu0 %v446
        %v448 = vpop.xlane.xlu0 %447
        %v449 = vmul.f32 %v448, %v442
        %v450 = vadd.f32 %v449, 1e-05
        %v451 = vrsqrt.pop %v450
        %v452 = vmul.f32 %v444, %v451
        %v453 = vld [vmem:[%s1] sm:$0x1]
        %v455 = vlaneseq
        %v456 = vshrl.u32 %v455, 7
        %v457 = vsub.s32 0, %v456
        %v458 = vrot.slane %v453, %v457
        %v460 = vmul.f32 %v452, %v458
        %v461 = vld [vmem:[%s2] sm:$0x1]
        %v463 = vlaneseq
        %v464 = vshrl.u32 %v463, 7
        %v465 = vsub.s32 0, %v464
        %v466 = vrot.slane %v461, %v465
        %v468 = vadd.f32 %v460, %v466
        %v469 = vpack.c.bf16 %v468, %v468
        %v470 = vld [vmem:[%s3] sm:$0xf]
        %v471 = vld [vmem:[%s3 + $0x4] sm:$0xf]
        %v472 = vld [vmem:[%s3 + $0x8] sm:$0xf]
        %v473 = vld [vmem:[%s3 + $0xc] sm:$0xf]
        %v474 = vld [vmem:[%s4] sm:$0x1]
        %v476 = vlaneseq
        %v477 = vshrl.u32 %v476, 7
        %v478 = vsub.s32 0, %v477
        %v479 = vrot.slane %v474, %v478
        %v485 = vunpack.c.l.b16 %v470
        %v486 = vunpack.c.l.b16 %v471
        %v487 = vunpack.c.l.b16 %v472
        %v488 = vunpack.c.l.b16 %v473
        %v489 = vpack.c.b16 %v486, %v485
        %v490 = vpack.c.b16 %v488, %v487
        %v494 = vsel %vm438, %v469, 0
        %496 = vmatprep.subr.bf16.mxu0 0
        %497 = vmatpush1.bf16.msra.mxu0 0
        %498 = vmatprep.subr.bf16.mxu0 0
        %499 = vmatpush1.bf16.msra.mxu0 0
        %500 = vmatprep.subr.bf16.mxu0 0
        %501 = vmatpush1.bf16.msra.mxu0 0
        %502 = vmatprep.subr.bf16.mxu0 0
        %503 = vmatpush1.bf16.msra.mxu0 0
        %504 = vmatprep.subr.bf16.mxu0 0
        %505 = vmatpush1.bf16.msra.mxu0 0
        %506 = vmatprep.subr.bf16.mxu0 0
        %507 = vmatpush1.bf16.msra.mxu0 0
        %508 = vmatprep.subr.bf16.mxu0 0
        %509 = vmatpush1.bf16.msra.mxu0 %v490
        %510 = vmatprep.subr.bf16.mxu0 0
        %511 = vmatpush1.bf16.msra.mxu0 %v489
        %512 = vmatprep.subr.bf16.mxu0 0
        %513 = vmatpush2.bf16.msra.mxu0 0
        %514 = vmatprep.subr.bf16.mxu0 0
        %515 = vmatpush2.bf16.msra.mxu0 0
        %516 = vmatprep.subr.bf16.mxu0 0
        %517 = vmatpush2.bf16.msra.mxu0 0
        %518 = vmatprep.subr.bf16.mxu0 0
        %519 = vmatpush2.bf16.msra.mxu0 0
        %520 = vmatprep.subr.bf16.mxu0 0
        %521 = vmatpush2.bf16.msra.mxu0 0
        %522 = vmatprep.subr.bf16.mxu0 0
        %523 = vmatpush2.bf16.msra.mxu0 0
        %524 = vmatprep.subr.bf16.mxu0 0
        %525 = vmatpush2.bf16.msra.mxu0 0
        %526 = vmatprep.subr.bf16.mxu0 0
        %527 = vmatpush2.bf16.msra.mxu0 0
        %528 = vmatprep.mubr.bf16.mxu0 0
        %529 = vmatmul.mubr.bf16.gmra.mxu0 %v494
        %v530 = vpop.f32.mrf.mxu0
        %v531 = vadd.f32 %v479, %v530
        %v532 = vpop.f32.mrf.mxu0
        %v533 = vpop.f32.mrf.mxu0
        %v534 = vpop.f32.mrf.mxu0
        %535 = vdwg.mxu0
        %537 = vrot.lane.b32.xlu0 %v531, 120
        %v538 = vpop.permute.xlu0 %537
        %540 = vrot.lane.b32.xlu0 %v531, 112
        %v541 = vpop.permute.xlu0 %540
        %543 = vrot.lane.b32.xlu0 %v531, 104
        %v544 = vpop.permute.xlu0 %543
        %v546 = vmul.f32 %v531, 0.35355338
        %v547 = vmul.f32 %v538, 0.35355338
        %v548 = vmul.f32 %v541, 0.35355338
        %v549 = vmul.f32 %v544, 0.35355338
        %v550 = vpack.c.bf16 %v546, %v546
        %v551 = vpack.c.bf16 %v547, %v547
        %v552 = vpack.c.bf16 %v548, %v548
        %v553 = vpack.c.bf16 %v549, %v549
        %v554 = vpack.c.bf16 %v531, %v531
        %v555 = vpack.c.bf16 %v538, %v538
        %v556 = vpack.c.bf16 %v541, %v541
        %v557 = vpack.c.bf16 %v544, %v544
        %559 = vrot.lane.b32.xlu0 %v554, 96
        %v560 = vpop.permute.xlu0 %559
        %vm561 = vcmask 64512
        %v563 = vsel %vm561, %v550, 0
        %v566 = vsel %vm561, %v560, 0
        %568 = vmatprep.subr.bf16.mxu0 0
        %569 = vmatpush1.bf16.xpose.msra.mxu0 0
        %570 = vmatprep.subr.bf16.mxu0 0
        %571 = vmatpush1.bf16.xpose.msra.mxu0 0
        %572 = vmatprep.subr.bf16.mxu0 0
        %573 = vmatpush1.bf16.xpose.msra.mxu0 0
        %574 = vmatprep.subr.bf16.mxu0 0
        %575 = vmatpush1.bf16.xpose.msra.mxu0 0
        %576 = vmatprep.subr.bf16.mxu0 0
        %577 = vmatpush1.bf16.xpose.msra.mxu0 0
        %578 = vmatprep.subr.bf16.mxu0 0
        %579 = vmatpush1.bf16.xpose.msra.mxu0 0
        %580 = vmatprep.subr.bf16.mxu0 0
        %581 = vmatpush1.bf16.xpose.msra.mxu0 0
        %582 = vmatprep.subr.bf16.mxu0 0
        %583 = vmatpush1.bf16.xpose.msra.mxu0 %v566
        %584 = vmatprep.subr.bf16.mxu0 0
        %585 = vmatpush2.bf16.xpose.msra.mxu0 0
        %586 = vmatprep.subr.bf16.mxu0 0
        %587 = vmatpush2.bf16.xpose.msra.mxu0 0
        %588 = vmatprep.subr.bf16.mxu0 0
        %589 = vmatpush2.bf16.xpose.msra.mxu0 0
        %590 = vmatprep.subr.bf16.mxu0 0
        %591 = vmatpush2.bf16.xpose.msra.mxu0 0
        %592 = vmatprep.subr.bf16.mxu0 0
        %593 = vmatpush2.bf16.xpose.msra.mxu0 0
        %594 = vmatprep.subr.bf16.mxu0 0
        %595 = vmatpush2.bf16.xpose.msra.mxu0 0
        %596 = vmatprep.subr.bf16.mxu0 0
        %597 = vmatpush2.bf16.xpose.msra.mxu0 0
        %598 = vmatprep.subr.bf16.mxu0 0
        %599 = vmatpush2.bf16.xpose.msra.mxu0 0
        %600 = vmatprep.mubr.bf16.mxu0 0
        %601 = vmatmul.mubr.bf16.gmra.mxu0 %v563
        %v602 = vpop.f32.mrf.mxu0
        %v603 = vadd.f32 0.0, %v602
        %v604 = vpop.f32.mrf.mxu0
        %v605 = vpop.f32.mrf.mxu0
        %v606 = vpop.f32.mrf.mxu0
        %607 = vdwg.mxu0
        %609 = vrot.lane.b32.xlu0 %v555, 96
        %v610 = vpop.permute.xlu0 %609
        %v612 = vsel %vm561, %v551, 0
        %v615 = vsel %vm561, %v610, 0
        %617 = vmatprep.subr.bf16.mxu0 0
        %618 = vmatpush1.bf16.xpose.msra.mxu0 0
        %619 = vmatprep.subr.bf16.mxu0 0
        %620 = vmatpush1.bf16.xpose.msra.mxu0 0
        %621 = vmatprep.subr.bf16.mxu0 0
        %622 = vmatpush1.bf16.xpose.msra.mxu0 0
        %623 = vmatprep.subr.bf16.mxu0 0
        %624 = vmatpush1.bf16.xpose.msra.mxu0 0
        %625 = vmatprep.subr.bf16.mxu0 0
        %626 = vmatpush1.bf16.xpose.msra.mxu0 0
        %627 = vmatprep.subr.bf16.mxu0 0
        %628 = vmatpush1.bf16.xpose.msra.mxu0 0
        %629 = vmatprep.subr.bf16.mxu0 0
        %630 = vmatpush1.bf16.xpose.msra.mxu0 0
        %631 = vmatprep.subr.bf16.mxu0 0
        %632 = vmatpush1.bf16.xpose.msra.mxu0 %v615
        %633 = vmatprep.subr.bf16.mxu0 0
        %634 = vmatpush2.bf16.xpose.msra.mxu0 0
        %635 = vmatprep.subr.bf16.mxu0 0
        %636 = vmatpush2.bf16.xpose.msra.mxu0 0
        %637 = vmatprep.subr.bf16.mxu0 0
        %638 = vmatpush2.bf16.xpose.msra.mxu0 0
        %639 = vmatprep.subr.bf16.mxu0 0
        %640 = vmatpush2.bf16.xpose.msra.mxu0 0
        %641 = vmatprep.subr.bf16.mxu0 0
        %642 = vmatpush2.bf16.xpose.msra.mxu0 0
        %643 = vmatprep.subr.bf16.mxu0 0
        %644 = vmatpush2.bf16.xpose.msra.mxu0 0
        %645 = vmatprep.subr.bf16.mxu0 0
        %646 = vmatpush2.bf16.xpose.msra.mxu0 0
        %647 = vmatprep.subr.bf16.mxu0 0
        %648 = vmatpush2.bf16.xpose.msra.mxu0 0
        %649 = vmatprep.mubr.bf16.mxu0 0
        %650 = vmatmul.mubr.bf16.gmra.mxu0 %v612
        %v651 = vpop.f32.mrf.mxu0
        %v652 = vadd.f32 0.0, %v651
        %v653 = vpop.f32.mrf.mxu0
        %v654 = vpop.f32.mrf.mxu0
        %v655 = vpop.f32.mrf.mxu0
        %656 = vdwg.mxu0
        %658 = vrot.lane.b32.xlu0 %v556, 96
        %v659 = vpop.permute.xlu0 %658
        %v661 = vsel %vm561, %v552, 0
        %v664 = vsel %vm561, %v659, 0
        %666 = vmatprep.subr.bf16.mxu0 0
        %667 = vmatpush1.bf16.xpose.msra.mxu0 0
        %668 = vmatprep.subr.bf16.mxu0 0
        %669 = vmatpush1.bf16.xpose.msra.mxu0 0
        %670 = vmatprep.subr.bf16.mxu0 0
        %671 = vmatpush1.bf16.xpose.msra.mxu0 0
        %672 = vmatprep.subr.bf16.mxu0 0
        %673 = vmatpush1.bf16.xpose.msra.mxu0 0
        %674 = vmatprep.subr.bf16.mxu0 0
        %675 = vmatpush1.bf16.xpose.msra.mxu0 0
        %676 = vmatprep.subr.bf16.mxu0 0
        %677 = vmatpush1.bf16.xpose.msra.mxu0 0
        %678 = vmatprep.subr.bf16.mxu0 0
        %679 = vmatpush1.bf16.xpose.msra.mxu0 0
        %680 = vmatprep.subr.bf16.mxu0 0
        %681 = vmatpush1.bf16.xpose.msra.mxu0 %v664
        %682 = vmatprep.subr.bf16.mxu0 0
        %683 = vmatpush2.bf16.xpose.msra.mxu0 0
        %684 = vmatprep.subr.bf16.mxu0 0
        %685 = vmatpush2.bf16.xpose.msra.mxu0 0
        %686 = vmatprep.subr.bf16.mxu0 0
        %687 = vmatpush2.bf16.xpose.msra.mxu0 0
        %688 = vmatprep.subr.bf16.mxu0 0
        %689 = vmatpush2.bf16.xpose.msra.mxu0 0
        %690 = vmatprep.subr.bf16.mxu0 0
        %691 = vmatpush2.bf16.xpose.msra.mxu0 0
        %692 = vmatprep.subr.bf16.mxu0 0
        %693 = vmatpush2.bf16.xpose.msra.mxu0 0
        %694 = vmatprep.subr.bf16.mxu0 0
        %695 = vmatpush2.bf16.xpose.msra.mxu0 0
        %696 = vmatprep.subr.bf16.mxu0 0
        %697 = vmatpush2.bf16.xpose.msra.mxu0 0
        %698 = vmatprep.mubr.bf16.mxu0 0
        %699 = vmatmul.mubr.bf16.gmra.mxu0 %v661
        %v700 = vpop.f32.mrf.mxu0
        %v701 = vadd.f32 0.0, %v700
        %v702 = vpop.f32.mrf.mxu0
        %v703 = vpop.f32.mrf.mxu0
        %v704 = vpop.f32.mrf.mxu0
        %705 = vdwg.mxu0
        %707 = vrot.lane.b32.xlu0 %v557, 96
        %v708 = vpop.permute.xlu0 %707
        %v710 = vsel %vm561, %v553, 0
        %v713 = vsel %vm561, %v708, 0
        %715 = vmatprep.subr.bf16.mxu0 0
        %716 = vmatpush1.bf16.xpose.msra.mxu0 0
        %717 = vmatprep.subr.bf16.mxu0 0
        %718 = vmatpush1.bf16.xpose.msra.mxu0 0
        %719 = vmatprep.subr.bf16.mxu0 0
        %720 = vmatpush1.bf16.xpose.msra.mxu0 0
        %721 = vmatprep.subr.bf16.mxu0 0
        %722 = vmatpush1.bf16.xpose.msra.mxu0 0
        %723 = vmatprep.subr.bf16.mxu0 0
        %724 = vmatpush1.bf16.xpose.msra.mxu0 0
        %725 = vmatprep.subr.bf16.mxu0 0
        %726 = vmatpush1.bf16.xpose.msra.mxu0 0
        %727 = vmatprep.subr.bf16.mxu0 0
        %728 = vmatpush1.bf16.xpose.msra.mxu0 0
        %729 = vmatprep.subr.bf16.mxu0 0
        %730 = vmatpush1.bf16.xpose.msra.mxu0 %v713
        %731 = vmatprep.subr.bf16.mxu0 0
        %732 = vmatpush2.bf16.xpose.msra.mxu0 0
        %733 = vmatprep.subr.bf16.mxu0 0
        %734 = vmatpush2.bf16.xpose.msra.mxu0 0
        %735 = vmatprep.subr.bf16.mxu0 0
        %736 = vmatpush2.bf16.xpose.msra.mxu0 0
        %737 = vmatprep.subr.bf16.mxu0 0
        %738 = vmatpush2.bf16.xpose.msra.mxu0 0
        %739 = vmatprep.subr.bf16.mxu0 0
        %740 = vmatpush2.bf16.xpose.msra.mxu0 0
        %741 = vmatprep.subr.bf16.mxu0 0
        %742 = vmatpush2.bf16.xpose.msra.mxu0 0
        %743 = vmatprep.subr.bf16.mxu0 0
        %744 = vmatpush2.bf16.xpose.msra.mxu0 0
        %745 = vmatprep.subr.bf16.mxu0 0
        %746 = vmatpush2.bf16.xpose.msra.mxu0 0
        %747 = vmatprep.mubr.bf16.mxu0 0
        %748 = vmatmul.mubr.bf16.gmra.mxu0 %v710
        %v749 = vpop.f32.mrf.mxu0
        %v750 = vadd.f32 0.0, %v749
        %v751 = vpop.f32.mrf.mxu0
        %v752 = vpop.f32.mrf.mxu0
        %v753 = vpop.f32.mrf.mxu0
        %754 = vdwg.mxu0
        %v755 = vlaneseq
        %v756 = vshrl.u32 %v755, 7
        %v757 = vlaneseq
        %v758 = vand.u32 %v757, 127
        %vm759 = vcmp.gt.s32.totalorder %v758, %v756
        %v760 = vsel %vm759, -1e+30, %v603
        %v761 = vsel %vm759, -1e+30, %v652
        %v762 = vsel %vm759, -1e+30, %v701
        %v763 = vsel %vm759, -1e+30, %v750
        %v764 = vsel %vm561, %v760, -inf
        %765 = vmax.xlane.f32.xlu0 %v764
        %v766 = vpop.xlane.xlu0 %765
        %v767 = vsel %vm561, %v761, -inf
        %768 = vmax.xlane.f32.xlu0 %v767
        %v769 = vpop.xlane.xlu0 %768
        %v770 = vsel %vm561, %v762, -inf
        %771 = vmax.xlane.f32.xlu0 %v770
        %v772 = vpop.xlane.xlu0 %771
        %v773 = vsel %vm561, %v763, -inf
        %774 = vmax.xlane.f32.xlu0 %v773
        %v775 = vpop.xlane.xlu0 %774
        %v776 = vsub.f32 %v760, %v766
        %v777 = vsub.f32 %v761, %v769
        %v778 = vsub.f32 %v762, %v772
        %v779 = vsub.f32 %v763, %v775
        %v780 = vmul.f32 %v776, 1.442695
        %v781 = vpow.pop %v780
        %v782 = vmul.f32 %v777, 1.442695
        %v783 = vpow.pop %v782
        %v784 = vmul.f32 %v778, 1.442695
        %v785 = vpow.pop %v784
        %v786 = vmul.f32 %v779, 1.442695
        %v787 = vpow.pop %v786
        %v788 = vsel %vm561, %v781, 0.0
        %789 = vadd.xlane.f32.xlu0 %v788
        %v790 = vpop.xlane.xlu0 %789
        %v791 = vsel %vm561, %v783, 0.0
        %792 = vadd.xlane.f32.xlu0 %v791
        %v793 = vpop.xlane.xlu0 %792
        %v794 = vsel %vm561, %v785, 0.0
        %795 = vadd.xlane.f32.xlu0 %v794
        %v796 = vpop.xlane.xlu0 %795
        %v797 = vsel %vm561, %v787, 0.0
        %798 = vadd.xlane.f32.xlu0 %v797
        %v799 = vpop.xlane.xlu0 %798
        %v800 = vrcp.pop %v790
        %v801 = vrcp.pop %v793
        %v802 = vrcp.pop %v796
        %v803 = vrcp.pop %v799
        %v804 = vmul.f32 %v781, %v800
        %v805 = vmul.f32 %v783, %v801
        %v806 = vmul.f32 %v785, %v802
        %v807 = vmul.f32 %v787, %v803
        %v808 = vpack.c.bf16 %v804, %v804
        %v809 = vpack.c.bf16 %v805, %v805
        %v810 = vpack.c.bf16 %v806, %v806
        %v811 = vpack.c.bf16 %v807, %v807
        %812 = vrot.lane.b32.xlu0 %v554, 64
        %v813 = vpop.permute.xlu0 %812
        %v815 = vsel %vm561, %v808, 0
        %vm817 = vcmask 1043456
        %v819 = vsel %vm817, %v813, 0
        %821 = vmatprep.subr.bf16.mxu0 0
        %822 = vmatpush1.bf16.msra.mxu0 0
        %823 = vmatprep.subr.bf16.mxu0 0
        %824 = vmatpush1.bf16.msra.mxu0 0
        %825 = vmatprep.subr.bf16.mxu0 0
        %826 = vmatpush1.bf16.msra.mxu0 0
        %827 = vmatprep.subr.bf16.mxu0 0
        %828 = vmatpush1.bf16.msra.mxu0 0
        %829 = vmatprep.subr.bf16.mxu0 0
        %830 = vmatpush1.bf16.msra.mxu0 0
        %831 = vmatprep.subr.bf16.mxu0 0
        %832 = vmatpush1.bf16.msra.mxu0 0
        %833 = vmatprep.subr.bf16.mxu0 0
        %834 = vmatpush1.bf16.msra.mxu0 0
        %835 = vmatprep.subr.bf16.mxu0 0
        %836 = vmatpush1.bf16.msra.mxu0 %v819
        %837 = vmatprep.subr.bf16.mxu0 0
        %838 = vmatpush2.bf16.msra.mxu0 0
        %839 = vmatprep.subr.bf16.mxu0 0
        %840 = vmatpush2.bf16.msra.mxu0 0
        %841 = vmatprep.subr.bf16.mxu0 0
        %842 = vmatpush2.bf16.msra.mxu0 0
        %843 = vmatprep.subr.bf16.mxu0 0
        %844 = vmatpush2.bf16.msra.mxu0 0
        %845 = vmatprep.subr.bf16.mxu0 0
        %846 = vmatpush2.bf16.msra.mxu0 0
        %847 = vmatprep.subr.bf16.mxu0 0
        %848 = vmatpush2.bf16.msra.mxu0 0
        %849 = vmatprep.subr.bf16.mxu0 0
        %850 = vmatpush2.bf16.msra.mxu0 0
        %851 = vmatprep.subr.bf16.mxu0 0
        %852 = vmatpush2.bf16.msra.mxu0 0
        %853 = vmatprep.mubr.bf16.mxu0 0
        %854 = vmatmul.mubr.bf16.gmra.mxu0 %v815
        %v855 = vpop.f32.mrf.mxu0
        %v856 = vadd.f32 0.0, %v855
        %v857 = vpop.f32.mrf.mxu0
        %v858 = vpop.f32.mrf.mxu0
        %v859 = vpop.f32.mrf.mxu0
        %860 = vdwg.mxu0
        %861 = vrot.lane.b32.xlu0 %v555, 64
        %v862 = vpop.permute.xlu0 %861
        %v864 = vsel %vm561, %v809, 0
        %v867 = vsel %vm817, %v862, 0
        %869 = vmatprep.subr.bf16.mxu0 0
        %870 = vmatpush1.bf16.msra.mxu0 0
        %871 = vmatprep.subr.bf16.mxu0 0
        %872 = vmatpush1.bf16.msra.mxu0 0
        %873 = vmatprep.subr.bf16.mxu0 0
        %874 = vmatpush1.bf16.msra.mxu0 0
        %875 = vmatprep.subr.bf16.mxu0 0
        %876 = vmatpush1.bf16.msra.mxu0 0
        %877 = vmatprep.subr.bf16.mxu0 0
        %878 = vmatpush1.bf16.msra.mxu0 0
        %879 = vmatprep.subr.bf16.mxu0 0
        %880 = vmatpush1.bf16.msra.mxu0 0
        %881 = vmatprep.subr.bf16.mxu0 0
        %882 = vmatpush1.bf16.msra.mxu0 0
        %883 = vmatprep.subr.bf16.mxu0 0
        %884 = vmatpush1.bf16.msra.mxu0 %v867
        %885 = vmatprep.subr.bf16.mxu0 0
        %886 = vmatpush2.bf16.msra.mxu0 0
        %887 = vmatprep.subr.bf16.mxu0 0
        %888 = vmatpush2.bf16.msra.mxu0 0
        %889 = vmatprep.subr.bf16.mxu0 0
        %890 = vmatpush2.bf16.msra.mxu0 0
        %891 = vmatprep.subr.bf16.mxu0 0
        %892 = vmatpush2.bf16.msra.mxu0 0
        %893 = vmatprep.subr.bf16.mxu0 0
        %894 = vmatpush2.bf16.msra.mxu0 0
        %895 = vmatprep.subr.bf16.mxu0 0
        %896 = vmatpush2.bf16.msra.mxu0 0
        %897 = vmatprep.subr.bf16.mxu0 0
        %898 = vmatpush2.bf16.msra.mxu0 0
        %899 = vmatprep.subr.bf16.mxu0 0
        %900 = vmatpush2.bf16.msra.mxu0 0
        %901 = vmatprep.mubr.bf16.mxu0 0
        %902 = vmatmul.mubr.bf16.gmra.mxu0 %v864
        %v903 = vpop.f32.mrf.mxu0
        %v904 = vadd.f32 0.0, %v903
        %v905 = vpop.f32.mrf.mxu0
        %v906 = vpop.f32.mrf.mxu0
        %v907 = vpop.f32.mrf.mxu0
        %908 = vdwg.mxu0
        %909 = vrot.lane.b32.xlu0 %v556, 64
        %v910 = vpop.permute.xlu0 %909
        %v912 = vsel %vm561, %v810, 0
        %v915 = vsel %vm817, %v910, 0
        %917 = vmatprep.subr.bf16.mxu0 0
        %918 = vmatpush1.bf16.msra.mxu0 0
        %919 = vmatprep.subr.bf16.mxu0 0
        %920 = vmatpush1.bf16.msra.mxu0 0
        %921 = vmatprep.subr.bf16.mxu0 0
        %922 = vmatpush1.bf16.msra.mxu0 0
        %923 = vmatprep.subr.bf16.mxu0 0
        %924 = vmatpush1.bf16.msra.mxu0 0
        %925 = vmatprep.subr.bf16.mxu0 0
        %926 = vmatpush1.bf16.msra.mxu0 0
        %927 = vmatprep.subr.bf16.mxu0 0
        %928 = vmatpush1.bf16.msra.mxu0 0
        %929 = vmatprep.subr.bf16.mxu0 0
        %930 = vmatpush1.bf16.msra.mxu0 0
        %931 = vmatprep.subr.bf16.mxu0 0
        %932 = vmatpush1.bf16.msra.mxu0 %v915
        %933 = vmatprep.subr.bf16.mxu0 0
        %934 = vmatpush2.bf16.msra.mxu0 0
        %935 = vmatprep.subr.bf16.mxu0 0
        %936 = vmatpush2.bf16.msra.mxu0 0
        %937 = vmatprep.subr.bf16.mxu0 0
        %938 = vmatpush2.bf16.msra.mxu0 0
        %939 = vmatprep.subr.bf16.mxu0 0
        %940 = vmatpush2.bf16.msra.mxu0 0
        %941 = vmatprep.subr.bf16.mxu0 0
        %942 = vmatpush2.bf16.msra.mxu0 0
        %943 = vmatprep.subr.bf16.mxu0 0
        %944 = vmatpush2.bf16.msra.mxu0 0
        %945 = vmatprep.subr.bf16.mxu0 0
        %946 = vmatpush2.bf16.msra.mxu0 0
        %947 = vmatprep.subr.bf16.mxu0 0
        %948 = vmatpush2.bf16.msra.mxu0 0
        %949 = vmatprep.mubr.bf16.mxu0 0
        %950 = vmatmul.mubr.bf16.gmra.mxu0 %v912
        %v951 = vpop.f32.mrf.mxu0
        %v952 = vadd.f32 0.0, %v951
        %v953 = vpop.f32.mrf.mxu0
        %v954 = vpop.f32.mrf.mxu0
        %v955 = vpop.f32.mrf.mxu0
        %956 = vdwg.mxu0
        %957 = vrot.lane.b32.xlu0 %v557, 64
        %v958 = vpop.permute.xlu0 %957
        %v960 = vsel %vm561, %v811, 0
        %v963 = vsel %vm817, %v958, 0
        %965 = vmatprep.subr.bf16.mxu0 0
        %966 = vmatpush1.bf16.msra.mxu0 0
        %967 = vmatprep.subr.bf16.mxu0 0
        %968 = vmatpush1.bf16.msra.mxu0 0
        %969 = vmatprep.subr.bf16.mxu0 0
        %970 = vmatpush1.bf16.msra.mxu0 0
        %971 = vmatprep.subr.bf16.mxu0 0
        %972 = vmatpush1.bf16.msra.mxu0 0
        %973 = vmatprep.subr.bf16.mxu0 0
        %974 = vmatpush1.bf16.msra.mxu0 0
        %975 = vmatprep.subr.bf16.mxu0 0
        %976 = vmatpush1.bf16.msra.mxu0 0
        %977 = vmatprep.subr.bf16.mxu0 0
        %978 = vmatpush1.bf16.msra.mxu0 0
        %979 = vmatprep.subr.bf16.mxu0 0
        %980 = vmatpush1.bf16.msra.mxu0 %v963
        %981 = vmatprep.subr.bf16.mxu0 0
        %982 = vmatpush2.bf16.msra.mxu0 0
        %983 = vmatprep.subr.bf16.mxu0 0
        %984 = vmatpush2.bf16.msra.mxu0 0
        %985 = vmatprep.subr.bf16.mxu0 0
        %986 = vmatpush2.bf16.msra.mxu0 0
        %987 = vmatprep.subr.bf16.mxu0 0
        %988 = vmatpush2.bf16.msra.mxu0 0
        %989 = vmatprep.subr.bf16.mxu0 0
        %990 = vmatpush2.bf16.msra.mxu0 0
        %991 = vmatprep.subr.bf16.mxu0 0
        %992 = vmatpush2.bf16.msra.mxu0 0
        %993 = vmatprep.subr.bf16.mxu0 0
        %994 = vmatpush2.bf16.msra.mxu0 0
        %995 = vmatprep.subr.bf16.mxu0 0
        %996 = vmatpush2.bf16.msra.mxu0 0
        %997 = vmatprep.mubr.bf16.mxu0 0
        %998 = vmatmul.mubr.bf16.gmra.mxu0 %v960
        %v999 = vpop.f32.mrf.mxu0
        %v1000 = vadd.f32 0.0, %v999
        %v1001 = vpop.f32.mrf.mxu0
        %v1002 = vpop.f32.mrf.mxu0
        %v1003 = vpop.f32.mrf.mxu0
        %1004 = vdwg.mxu0
        %1006 = vrot.lane.b32.xlu0 %v904, 8
        %v1007 = vpop.permute.xlu0 %1006
        %1010 = vrot.lane.b32.xlu0 %v952, 16
        %v1011 = vpop.permute.xlu0 %1010
        %1014 = vrot.lane.b32.xlu0 %v1000, 24
        %v1015 = vpop.permute.xlu0 %1014
        %v1017 = vsel %vm561, %v856, %v1007
        %vm1018 = vcmask 130048
        %v1019 = vsel %vm1018, %v1017, %v1011
        %vm1020 = vcmask 195584
        %v1021 = vsel %vm1020, %v1019, %v1015
        %v1022 = vpack.c.bf16 %v1021, %v1021
        %v1023 = vld [vmem:[%s5] sm:$0xf]
        %v1024 = vld [vmem:[%s5 + $0x4] sm:$0xf]
        %v1025 = vld [vmem:[%s5 + $0x8] sm:$0xf]
        %v1026 = vld [vmem:[%s5 + $0xc] sm:$0xf]
        %v1027 = vld [vmem:[%s6] sm:$0x1]
        %v1029 = vlaneseq
        %v1030 = vshrl.u32 %v1029, 7
        %v1031 = vsub.s32 0, %v1030
        %v1032 = vrot.slane %v1027, %v1031
        %v1038 = vunpack.c.l.b16 %v1023
        %v1039 = vunpack.c.l.b16 %v1024
        %v1040 = vunpack.c.l.b16 %v1025
        %v1041 = vunpack.c.l.b16 %v1026
        %v1042 = vpack.c.b16 %v1039, %v1038
        %v1043 = vpack.c.b16 %v1041, %v1040
        %v1047 = vsel %vm438, %v1022, 0
        %1049 = vmatprep.subr.bf16.mxu0 0
        %1050 = vmatpush1.bf16.msra.mxu0 0
        %1051 = vmatprep.subr.bf16.mxu0 0
        %1052 = vmatpush1.bf16.msra.mxu0 0
        %1053 = vmatprep.subr.bf16.mxu0 0
        %1054 = vmatpush1.bf16.msra.mxu0 0
        %1055 = vmatprep.subr.bf16.mxu0 0
        %1056 = vmatpush1.bf16.msra.mxu0 0
        %1057 = vmatprep.subr.bf16.mxu0 0
        %1058 = vmatpush1.bf16.msra.mxu0 0
        %1059 = vmatprep.subr.bf16.mxu0 0
        %1060 = vmatpush1.bf16.msra.mxu0 0
        %1061 = vmatprep.subr.bf16.mxu0 0
        %1062 = vmatpush1.bf16.msra.mxu0 %v1043
        %1063 = vmatprep.subr.bf16.mxu0 0
        %1064 = vmatpush1.bf16.msra.mxu0 %v1042
        %1065 = vmatprep.subr.bf16.mxu0 0
        %1066 = vmatpush2.bf16.msra.mxu0 0
        %1067 = vmatprep.subr.bf16.mxu0 0
        %1068 = vmatpush2.bf16.msra.mxu0 0
        %1069 = vmatprep.subr.bf16.mxu0 0
        %1070 = vmatpush2.bf16.msra.mxu0 0
        %1071 = vmatprep.subr.bf16.mxu0 0
        %1072 = vmatpush2.bf16.msra.mxu0 0
        %1073 = vmatprep.subr.bf16.mxu0 0
        %1074 = vmatpush2.bf16.msra.mxu0 0
        %1075 = vmatprep.subr.bf16.mxu0 0
        %1076 = vmatpush2.bf16.msra.mxu0 0
        %1077 = vmatprep.subr.bf16.mxu0 0
        %1078 = vmatpush2.bf16.msra.mxu0 0
        %1079 = vmatprep.subr.bf16.mxu0 0
        %1080 = vmatpush2.bf16.msra.mxu0 0
        %1081 = vmatprep.mubr.bf16.mxu0 0
        %1082 = vmatmul.mubr.bf16.gmra.mxu0 %v1047
        %v1083 = vpop.f32.mrf.mxu0
        %v1084 = vadd.f32 %v1032, %v1083
        %v1085 = vpop.f32.mrf.mxu0
        %v1086 = vpop.f32.mrf.mxu0
        %v1087 = vpop.f32.mrf.mxu0
        %1088 = vdwg.mxu0
        %v1089 = vadd.f32 %v437, %v1084
        %v1090 = vsel %vm438, %v1089, 0.0
        %1091 = vadd.xlane.f32.xlu0 %v1090
        %v1092 = vpop.xlane.xlu0 %1091
        %v1093 = vmul.f32 %v1092, %v442
        %v1094 = vsub.f32 %v1089, %v1093
        %v1095 = vmul.f32 %v1094, %v1094
        %v1096 = vsel %vm438, %v1095, 0.0
        %1097 = vadd.xlane.f32.xlu0 %v1096
        %v1098 = vpop.xlane.xlu0 %1097
        %v1099 = vmul.f32 %v1098, %v442
        %v1100 = vadd.f32 %v1099, 1e-05
        %v1101 = vrsqrt.pop %v1100
        %v1102 = vmul.f32 %v1094, %v1101
        %v1103 = vld [vmem:[%s7] sm:$0x1]
        %v1105 = vlaneseq
        %v1106 = vshrl.u32 %v1105, 7
        %v1107 = vsub.s32 0, %v1106
        %v1108 = vrot.slane %v1103, %v1107
        %v1110 = vmul.f32 %v1102, %v1108
        %v1111 = vld [vmem:[%s8] sm:$0x1]
        %v1113 = vlaneseq
        %v1114 = vshrl.u32 %v1113, 7
        %v1115 = vsub.s32 0, %v1114
        %v1116 = vrot.slane %v1111, %v1115
        %v1118 = vadd.f32 %v1110, %v1116
        %v1119 = vpack.c.bf16 %v1118, %v1118
        %v1120 = vld [vmem:[%s9] sm:$0xf]
        %v1121 = vld [vmem:[%s9 + $0x4] sm:$0xf]
        %v1122 = vld [vmem:[%s9 + $0x8] sm:$0xf]
        %v1123 = vld [vmem:[%s9 + $0xc] sm:$0xf]
        %v1124 = vld [vmem:[%s10] sm:$0x1]
        %v1126 = vlaneseq
        %v1127 = vshrl.u32 %v1126, 7
        %v1128 = vsub.s32 0, %v1127
        %v1129 = vrot.slane %v1124, %v1128
        %v1135 = vunpack.c.l.b16 %v1120
        %v1136 = vunpack.c.l.b16 %v1121
        %v1137 = vunpack.c.l.b16 %v1122
        %v1138 = vunpack.c.l.b16 %v1123
        %v1139 = vpack.c.b16 %v1136, %v1135
        %v1140 = vpack.c.b16 %v1138, %v1137
        %v1144 = vsel %vm438, %v1119, 0
        %1146 = vmatprep.subr.bf16.mxu0 0
        %1147 = vmatpush1.bf16.msra.mxu0 0
        %1148 = vmatprep.subr.bf16.mxu0 0
        %1149 = vmatpush1.bf16.msra.mxu0 0
        %1150 = vmatprep.subr.bf16.mxu0 0
        %1151 = vmatpush1.bf16.msra.mxu0 0
        %1152 = vmatprep.subr.bf16.mxu0 0
        %1153 = vmatpush1.bf16.msra.mxu0 0
        %1154 = vmatprep.subr.bf16.mxu0 0
        %1155 = vmatpush1.bf16.msra.mxu0 0
        %1156 = vmatprep.subr.bf16.mxu0 0
        %1157 = vmatpush1.bf16.msra.mxu0 0
        %1158 = vmatprep.subr.bf16.mxu0 0
        %1159 = vmatpush1.bf16.msra.mxu0 %v1140
        %1160 = vmatprep.subr.bf16.mxu0 0
        %1161 = vmatpush1.bf16.msra.mxu0 %v1139
        %1162 = vmatprep.subr.bf16.mxu0 0
        %1163 = vmatpush2.bf16.msra.mxu0 0
        %1164 = vmatprep.subr.bf16.mxu0 0
        %1165 = vmatpush2.bf16.msra.mxu0 0
        %1166 = vmatprep.subr.bf16.mxu0 0
        %1167 = vmatpush2.bf16.msra.mxu0 0
        %1168 = vmatprep.subr.bf16.mxu0 0
        %1169 = vmatpush2.bf16.msra.mxu0 0
        %1170 = vmatprep.subr.bf16.mxu0 0
        %1171 = vmatpush2.bf16.msra.mxu0 0
        %1172 = vmatprep.subr.bf16.mxu0 0
        %1173 = vmatpush2.bf16.msra.mxu0 0
        %1174 = vmatprep.subr.bf16.mxu0 0
        %1175 = vmatpush2.bf16.msra.mxu0 0
        %1176 = vmatprep.subr.bf16.mxu0 0
        %1177 = vmatpush2.bf16.msra.mxu0 0
        %1178 = vmatprep.mubr.bf16.mxu0 0
        %1179 = vmatmul.mubr.bf16.gmra.mxu0 %v1144
        %v1180 = vpop.f32.mrf.mxu0
        %v1181 = vadd.f32 %v1129, %v1180
        %v1182 = vpop.f32.mrf.mxu0
        %v1183 = vpop.f32.mrf.mxu0
        %v1184 = vpop.f32.mrf.mxu0
        %1185 = vdwg.mxu0
        %v1186 = vmul.f32 %v1181, 1.702
        %v1187 = vxor.u32 %v1186, 2147483648
        %v1188 = vmul.f32 %v1187, 1.442695
        %v1189 = vpow.pop %v1188
        %v1190 = vadd.f32 %v1189, 1.0
        %v1191 = vrcp.pop %v1190
        %v1192 = vmul.f32 1.0, %v1191
        %v1193 = vmul.f32 %v1181, %v1192
        %v1194 = vpack.c.bf16 %v1193, %v1193
        %v1195 = vld [vmem:[%s11] sm:$0xf]
        %v1196 = vld [vmem:[%s11 + $0x4] sm:$0xf]
        %v1197 = vld [vmem:[%s11 + $0x8] sm:$0xf]
        %v1198 = vld [vmem:[%s11 + $0xc] sm:$0xf]
        %v1199 = vld [vmem:[%s11 + $0x10] sm:$0xf]
        %v1200 = vld [vmem:[%s11 + $0x14] sm:$0xf]
        %v1201 = vld [vmem:[%s11 + $0x18] sm:$0xf]
        %v1202 = vld [vmem:[%s11 + $0x1c] sm:$0xf]
        %v1203 = vld [vmem:[%s11 + $0x20] sm:$0xf]
        %v1204 = vld [vmem:[%s11 + $0x24] sm:$0xf]
        %v1205 = vld [vmem:[%s11 + $0x28] sm:$0xf]
        %v1206 = vld [vmem:[%s11 + $0x2c] sm:$0xf]
        %v1207 = vld [vmem:[%s11 + $0x30] sm:$0xf]
        %v1208 = vld [vmem:[%s11 + $0x34] sm:$0xf]
        %v1209 = vld [vmem:[%s11 + $0x38] sm:$0xf]
        %v1210 = vld [vmem:[%s11 + $0x3c] sm:$0xf]
        %v1211 = vld [vmem:[%s12] sm:$0x1]
        %v1213 = vlaneseq
        %v1214 = vshrl.u32 %v1213, 7
        %v1215 = vsub.s32 0, %v1214
        %v1216 = vrot.slane %v1211, %v1215
        %v1234 = vunpack.c.l.b16 %v1195
        %v1235 = vunpack.c.l.b16 %v1196
        %v1236 = vunpack.c.l.b16 %v1197
        %v1237 = vunpack.c.l.b16 %v1198
        %v1238 = vunpack.c.l.b16 %v1199
        %v1239 = vunpack.c.l.b16 %v1200
        %v1240 = vunpack.c.l.b16 %v1201
        %v1241 = vunpack.c.l.b16 %v1202
        %v1242 = vunpack.c.l.b16 %v1203
        %v1243 = vunpack.c.l.b16 %v1204
        %v1244 = vunpack.c.l.b16 %v1205
        %v1245 = vunpack.c.l.b16 %v1206
        %v1246 = vunpack.c.l.b16 %v1207
        %v1247 = vunpack.c.l.b16 %v1208
        %v1248 = vunpack.c.l.b16 %v1209
        %v1249 = vunpack.c.l.b16 %v1210
        %v1250 = vpack.c.b16 %v1235, %v1234
        %v1251 = vpack.c.b16 %v1237, %v1236
        %v1252 = vpack.c.b16 %v1239, %v1238
        %v1253 = vpack.c.b16 %v1241, %v1240
        %v1254 = vpack.c.b16 %v1243, %v1242
        %v1255 = vpack.c.b16 %v1245, %v1244
        %v1256 = vpack.c.b16 %v1247, %v1246
        %v1257 = vpack.c.b16 %v1249, %v1248
        %1266 = vmatprep.subr.bf16.mxu0 0
        %1267 = vmatpush1.bf16.msra.mxu0 %v1257
        %1268 = vmatprep.subr.bf16.mxu0 0
        %1269 = vmatpush1.bf16.msra.mxu0 %v1256
        %1270 = vmatprep.subr.bf16.mxu0 0
        %1271 = vmatpush1.bf16.msra.mxu0 %v1255
        %1272 = vmatprep.subr.bf16.mxu0 0
        %1273 = vmatpush1.bf16.msra.mxu0 %v1254
        %1274 = vmatprep.subr.bf16.mxu0 0
        %1275 = vmatpush1.bf16.msra.mxu0 %v1253
        %1276 = vmatprep.subr.bf16.mxu0 0
        %1277 = vmatpush1.bf16.msra.mxu0 %v1252
        %1278 = vmatprep.subr.bf16.mxu0 0
        %1279 = vmatpush1.bf16.msra.mxu0 %v1251
        %1280 = vmatprep.subr.bf16.mxu0 0
        %1281 = vmatpush1.bf16.msra.mxu0 %v1250
        %1282 = vmatprep.subr.bf16.mxu0 0
        %1283 = vmatpush2.bf16.msra.mxu0 0
        %1284 = vmatprep.subr.bf16.mxu0 0
        %1285 = vmatpush2.bf16.msra.mxu0 0
        %1286 = vmatprep.subr.bf16.mxu0 0
        %1287 = vmatpush2.bf16.msra.mxu0 0
        %1288 = vmatprep.subr.bf16.mxu0 0
        %1289 = vmatpush2.bf16.msra.mxu0 0
        %1290 = vmatprep.subr.bf16.mxu0 0
        %1291 = vmatpush2.bf16.msra.mxu0 0
        %1292 = vmatprep.subr.bf16.mxu0 0
        %1293 = vmatpush2.bf16.msra.mxu0 0
        %1294 = vmatprep.subr.bf16.mxu0 0
        %1295 = vmatpush2.bf16.msra.mxu0 0
        %1296 = vmatprep.subr.bf16.mxu0 0
        %1297 = vmatpush2.bf16.msra.mxu0 0
        %1298 = vmatprep.mubr.bf16.mxu0 0
        %1299 = vmatmul.mubr.bf16.gmra.mxu0 %v1194
        %v1300 = vpop.f32.mrf.mxu0
        %v1301 = vadd.f32 %v1216, %v1300
        %v1302 = vpop.f32.mrf.mxu0
        %v1303 = vpop.f32.mrf.mxu0
        %v1304 = vpop.f32.mrf.mxu0
        %1305 = vdwg.mxu0
        %v1306 = vadd.f32 %v1089, %v1301
        %1307 = vst.msk [vmem:[%s431] sm:$0xff] %vm438, %v1306
        %s1308 = sand.u32 %s313, 1
        %s1309 = scalar_lea.sflag [#allocation3], %s1308
        %s1310 = sand.u32 %s313, 1
        %s1311 = smul.addr %s1310, 8
        %s1312 = scalar_lea.vmem [#allocation2], %s1311
        // Predicated region
        $region73: #{tpu_custom_call.1} parent=71 // pred_check
          %p1313 = pneg %p323
        $region74: #{tpu_custom_call.1} parent=71 // pred_check_branch
          %1315 = sbr.rel (%p1313) target = $region76
        $region75: #{tpu_custom_call.1} parent=71 // pred_region
          %s1317 = ssub.s32 128, 128
          %1318 = vsyncadd %s1309, %s1317
          %s1319 = smul.addr %s27, 128
          %s1320 = scalar_lea.hbm %s13, %s1319
          %s1322 = sshll.u32 %s1312, 4
          %s1323 = int_to_ptr.vmem [resolvable:$true] %s1322
          %1325 = dma.vmem_to_hbm [thread:$0]  %s1323, 128, %s1320, %s1309
        $region76: #{tpu_custom_call.1} parent=71 // pred_fallthru
          _
      $region72: #{tpu_custom_call.1} parent=5 // pred_fallthru
        _
      %p1326 = scmp.le.s32.totalorder 2, %s22
      // Predicated region
      $region77: #{tpu_custom_call.1} parent=5 // pred_check
        %p1327 = pneg %p1326
      $region78: #{tpu_custom_call.1} parent=5 // pred_check_branch
        %1329 = sbr.rel (%p1327) target = $region80
      $region79: #{tpu_custom_call.1} parent=5 // pred_region
        %s1330 = ssub.s32 %s22, 2
        // Predicated region
        $region81: #{tpu_custom_call.1} parent=79 // pred_check
          %p1331 = pneg %p329
        $region82: #{tpu_custom_call.1} parent=79 // pred_check_branch
          %1333 = sbr.rel (%p1331) target = $region84
        $region83: #{tpu_custom_call.1} parent=79 // pred_region
          %s1334 = sand.u32 %s314, 1
          %s1335 = scalar_lea.sflag [#allocation3], %s1334
          %s1336 = sand.u32 %s314, 1
          %s1337 = smul.addr %s1336, 8
          %s1338 = scalar_lea.vmem [#allocation2], %s1337
          %1339 = dma.done %s1335, 128
        $region84: #{tpu_custom_call.1} parent=79 // pred_fallthru
          _
      $region80: #{tpu_custom_call.1} parent=5 // pred_fallthru
        _
    $region6: #{tpu_custom_call.1} parent=1 // loop_footer
      %s26 = sadd.s32 1, %s22
    $region7: #{tpu_custom_call.1} parent=1 // loop_footer_branch
      %21 = sbr.rel target = $region3
    $region8: #{tpu_custom_call.1} parent=1 // loop_exit
      _
    %1340 = vsyncpa [#allocation3], 1
    %s1341 = scalar_lea.sflag [#allocation3], 1
    %1342 = vsyncpa %s1341, 1

</llo_original>
